<compile_context>
chip_gen: v7x
topology: tpu7x:2x2x1
jax: 0.10.0
libtpu: 0.0.40
codegen_flags: <defaults>
</compile_context>

<pallas_src>
import jax
import jax.numpy as jnp
from jax import lax
from jax.experimental import pallas as pl
from jax.experimental.pallas import tpu as pltpu


def _round_up(n, m):
    return (n + m - 1) // m * m


def _lstm_kernel(g0_ref, whh0_ref, w1_ref, b1_ref, out_ref,
                 hcat_ref, c0_ref, c1_ref):
    Bp = hcat_ref.shape[0]
    Hp = hcat_ref.shape[1] // 2
    Tc = g0_ref.shape[0]

    # State lives in scratch and persists across grid steps; init only on chunk 0.
    @pl.when(pl.program_id(0) == 0)
    def _init():
        hcat_ref[...] = jnp.zeros((Bp, 2 * Hp), jnp.bfloat16)  # [h0 | h1]
        zc = jnp.zeros((Bp, Hp), jnp.float32)
        c0_ref[...] = zc
        c1_ref[...] = zc

    # Hoisted out of the time loop: weight loads + bias broadcast (no per-step
    # broadcast_in_dim, no per-step weight reload).
    whh0 = whh0_ref[...]                                    # (Hp, 4Hp)  bf16
    w1 = w1_ref[...]                                        # (2Hp, 4Hp) bf16
    b1 = jnp.broadcast_to(b1_ref[...], (Bp, 4 * Hp))        # (Bp, 4Hp)  f32

    def gates_to_hc(gates, c):
        # PyTorch gate order [i, f, g, o]; Hp is a multiple of 128 so every slice
        # is lane-aligned.
        i = jax.nn.sigmoid(gates[:, 0 * Hp:1 * Hp])
        f = jax.nn.sigmoid(gates[:, 1 * Hp:2 * Hp])
        g = jnp.tanh(gates[:, 2 * Hp:3 * Hp])
        o = jax.nn.sigmoid(gates[:, 3 * Hp:4 * Hp])
        c_new = f * c + i * g
        h_new = o * jnp.tanh(c_new)
        return h_new, c_new

    def body(t, carry):
        # Layer 0: input projection was precomputed (streamed in g0_ref); only the
        # recurrent matmul is on the serial critical path.  h0_{t-1} is the bf16
        # left half of the packed state.
        g0 = g0_ref[t] + jnp.dot(hcat_ref[:, :Hp], whh0,
                                 preferred_element_type=jnp.float32)
        h0n, c0n = gates_to_hc(g0, c0_ref[...])
        c0_ref[...] = c0n
        hcat_ref[:, :Hp] = h0n.astype(jnp.bfloat16)

        # Layer 1: fused input + recurrent matmul: [h0_t | h1_{t-1}] @ [Wih1 ; Whh1].
        g1 = jnp.dot(hcat_ref[...], w1, preferred_element_type=jnp.float32) + b1
        h1n, c1n = gates_to_hc(g1, c1_ref[...])
        c1_ref[...] = c1n
        hcat_ref[:, Hp:] = h1n.astype(jnp.bfloat16)

        out_ref[t] = h1n                   # lane-dense (Bp, Hp) f32 store into VMEM block
        return carry

    # Fully unroll the per-chunk time loop (small static trip count).
    lax.fori_loop(0, Tc, body, 0, unroll=True)


def lstm_pallas(x, raw, *, t_chunk=4):
    """x: (T, B, I) f32, raw: PyTorch-layout LSTM params -> (T, B, H) f32."""
    T, B, I = x.shape
    H = raw["w_hh_l0"].shape[1]

    Hp = _round_up(H, 128)                 # lane-aligned hidden/gate width
    Bp = _round_up(max(B, 8), 8)           # full sublanes
    Tp = _round_up(T, t_chunk)

    # ---- prepare weights: transpose, pad per-gate to Hp, fuse, cast to bf16 -------
    def pad_gate_cols(w_t):                # (K, 4H) -> (K, 4Hp), per-gate blocks
        out = jnp.zeros((w_t.shape[0], 4 * Hp), w_t.dtype)
        for g in range(4):
            out = out.at[:, g * Hp:g * Hp + H].set(w_t[:, g * H:(g + 1) * H])
        return out

    def pad_rows(w, rows):                 # zero-pad contraction dim
        return jnp.zeros((rows, w.shape[1]), w.dtype).at[:w.shape[0], :].set(w)

    wih0 = pad_gate_cols(raw["w_ih_l0"].T).astype(jnp.bfloat16)                # (I, 4Hp)
    whh0 = pad_rows(pad_gate_cols(raw["w_hh_l0"].T), Hp).astype(jnp.bfloat16)  # (Hp, 4Hp)
    b0 = pad_gate_cols((raw["b_ih_l0"] + raw["b_hh_l0"])[None, :])             # (1, 4Hp) f32
    wih1 = pad_rows(pad_gate_cols(raw["w_ih_l1"].T), Hp).astype(jnp.bfloat16)
    whh1 = pad_rows(pad_gate_cols(raw["w_hh_l1"].T), Hp).astype(jnp.bfloat16)
    w1 = jnp.concatenate([wih1, whh1], axis=0)                                 # (2Hp, 4Hp)
    b1 = pad_gate_cols((raw["b_ih_l1"] + raw["b_hh_l1"])[None, :])             # (1, 4Hp) f32

    # ---- hoisted layer-0 input projection: one big matmul, bias folded in ---------
    xp = jnp.zeros((Tp, Bp, I), jnp.float32).at[:T, :B, :].set(x)
    g0 = (jnp.dot(xp.reshape(Tp * Bp, I).astype(jnp.bfloat16), wih0,
                  preferred_element_type=jnp.float32) + b0).reshape(Tp, Bp, 4 * Hp)

    grid = (Tp // t_chunk,)
    out = pl.pallas_call(
        _lstm_kernel,
        out_shape=jax.ShapeDtypeStruct((Tp, Bp, Hp), jnp.float32),
        grid_spec=pltpu.PrefetchScalarGridSpec(
            num_scalar_prefetch=0,
            grid=grid,
            in_specs=[
                # streamed per T-chunk (double-buffered by the pipeline)
                pl.BlockSpec((t_chunk, Bp, 4 * Hp), lambda t: (t, 0, 0)),
                # weights / bias: constant block index -> stay resident in VMEM
                pl.BlockSpec((Hp, 4 * Hp), lambda t: (0, 0)),
                pl.BlockSpec((2 * Hp, 4 * Hp), lambda t: (0, 0)),
                pl.BlockSpec((1, 4 * Hp), lambda t: (0, 0)),
            ],
            out_specs=pl.BlockSpec((t_chunk, Bp, Hp), lambda t: (t, 0, 0)),
            scratch_shapes=[
                pltpu.VMEM((Bp, 2 * Hp), jnp.bfloat16),  # packed [h0 | h1]
                pltpu.VMEM((Bp, Hp), jnp.float32),       # c layer 0
                pltpu.VMEM((Bp, Hp), jnp.float32),       # c layer 1
            ]),
        compiler_params=pltpu.CompilerParams(
            dimension_semantics=("arbitrary",)),         # sequential recurrence over T
    )(g0, whh0, w1, b1)

    return out[:T, :B, :H]


def init_params(key, input_size, hidden_size):
    """Deterministic init with PyTorch nn.LSTM layout (2 layers)."""
    H = hidden_size
    k = 1.0 / jnp.sqrt(jnp.float32(H))
    keys = jax.random.split(key, 8)

    def u(kk, shape):
        return jax.random.uniform(kk, shape, jnp.float32, minval=-k, maxval=k)

    return {
        "w_ih_l0": u(keys[0], (4 * H, input_size)),
        "w_hh_l0": u(keys[1], (4 * H, H)),
        "b_ih_l0": u(keys[2], (4 * H,)),
        "b_hh_l0": u(keys[3], (4 * H,)),
        "w_ih_l1": u(keys[4], (4 * H, H)),
        "w_hh_l1": u(keys[5], (4 * H, H)),
        "b_ih_l1": u(keys[6], (4 * H,)),
        "b_hh_l1": u(keys[7], (4 * H,)),
    }


def lstm_reference(x, raw):
    """Pure-JAX reference of the same math (PyTorch semantics; matmul operands in
    bf16 with f32 accumulation to match the kernel's precision)."""
    H = raw["w_hh_l0"].shape[1]
    B = x.shape[1]
    wih0 = raw["w_ih_l0"].T.astype(jnp.bfloat16)
    whh0 = raw["w_hh_l0"].T.astype(jnp.bfloat16)
    b0 = (raw["b_ih_l0"] + raw["b_hh_l0"])[None, :]
    wih1 = raw["w_ih_l1"].T.astype(jnp.bfloat16)
    whh1 = raw["w_hh_l1"].T.astype(jnp.bfloat16)
    b1 = (raw["b_ih_l1"] + raw["b_hh_l1"])[None, :]

    def cell(x_t, h, c, wih, whh, b):
        gates = (jnp.dot(x_t.astype(jnp.bfloat16), wih, preferred_element_type=jnp.float32)
                 + jnp.dot(h.astype(jnp.bfloat16), whh, preferred_element_type=jnp.float32)
                 + b)
        i = jax.nn.sigmoid(gates[:, 0 * H:1 * H])
        f = jax.nn.sigmoid(gates[:, 1 * H:2 * H])
        g = jnp.tanh(gates[:, 2 * H:3 * H])
        o = jax.nn.sigmoid(gates[:, 3 * H:4 * H])
        c = f * c + i * g
        h = o * jnp.tanh(c)
        return h, c

    def step(carry, x_t):
        h0, c0, h1, c1 = carry
        h0, c0 = cell(x_t, h0, c0, wih0, whh0, b0)
        h1, c1 = cell(h0, h1, c1, wih1, whh1, b1)
        return (h0, c0, h1, c1), h1

    z = jnp.zeros((B, H), jnp.float32)
    _, out = lax.scan(step, (z, z, z, z), x)
    return out


if __name__ == "__main__":
    input_size = 1
    hidden_size = 32
    seq_len = 8
    batch = 2

    key = jax.random.PRNGKey(0)
    k_x, k_p = jax.random.split(key)
    x = jax.random.normal(k_x, (seq_len, batch, input_size), jnp.float32)
    raw = init_params(k_p, input_size, hidden_size)

    out = jax.block_until_ready(lstm_pallas(x, raw, t_chunk=4))
    ref = jax.block_until_ready(lstm_reference(x, raw))

    assert out.shape == (seq_len, batch, hidden_size)
    assert jnp.allclose(out, ref, atol=5e-3, rtol=5e-3), "mismatch vs reference"
    print("KERNEL_OK")
</pallas_src>

<mosaic_0001>
module attributes {stable_mosaic.version = 11 : i64} {
  func.func @_lstm_kernel(%arg0: i32, %arg1: memref<4x8x512xf32, #tpu.memory_space<vmem>>, %arg2: memref<128x512xbf16, #tpu.memory_space<vmem>>, %arg3: memref<256x512xbf16, #tpu.memory_space<vmem>>, %arg4: memref<1x512xf32, #tpu.memory_space<vmem>>, %arg5: memref<4x8x128xf32, #tpu.memory_space<vmem>>, %arg6: memref<8x256xbf16, #tpu.memory_space<vmem>>, %arg7: memref<8x128xf32, #tpu.memory_space<vmem>>, %arg8: memref<8x128xf32, #tpu.memory_space<vmem>>) attributes {dimension_semantics = [#tpu.dimension_semantics<arbitrary>], iteration_bounds = array<i64: 2>, scalar_prefetch = 0 : i64, scratch_operands = 3 : i64, tpu.core_type = #tpu.core_type<tc>, window_params = [{transform_indices = @transform_0, window_bounds = array<i64: 4, 8, 512>}, {pipeline_mode = #tpu.pipeline_mode<synchronous>, transform_indices = @transform_1, window_bounds = array<i64: 128, 512>}, {pipeline_mode = #tpu.pipeline_mode<synchronous>, transform_indices = @transform_2, window_bounds = array<i64: 256, 512>}, {pipeline_mode = #tpu.pipeline_mode<synchronous>, transform_indices = @transform_3, window_bounds = array<i64: 1, 512>}, {transform_indices = @transform_4, window_bounds = array<i64: 4, 8, 128>}]} {
    %c0_i32 = arith.constant 0 : i32
    %0 = arith.cmpi eq, %arg0, %c0_i32 : i32
    %1 = arith.extui %0 : i1 to i32
    %c0_i32_0 = arith.constant 0 : i32
    %2 = arith.cmpi ne, %1, %c0_i32_0 : i32
    scf.if %2 {
      %cst_117 = arith.constant 0.000000e+00 : bf16
      %292 = vector.broadcast %cst_117 : bf16 to vector<8x256xbf16>
      %c0_118 = arith.constant 0 : index
      %c0_119 = arith.constant 0 : index
      %293 = vector.load %arg6[%c0_118, %c0_119] : memref<8x256xbf16, #tpu.memory_space<vmem>>, vector<8x256xbf16>
      tpu.vector_store %arg6[%c0_118, %c0_119], %292 {strides = array<i32>} : memref<8x256xbf16, #tpu.memory_space<vmem>>, vector<8x256xbf16>,
      %cst_120 = arith.constant 0.000000e+00 : f32
      %294 = vector.broadcast %cst_120 : f32 to vector<8x128xf32>
      %c0_121 = arith.constant 0 : index
      %c0_122 = arith.constant 0 : index
      %295 = vector.load %arg7[%c0_121, %c0_122] : memref<8x128xf32, #tpu.memory_space<vmem>>, vector<8x128xf32>
      tpu.vector_store %arg7[%c0_121, %c0_122], %294 {strides = array<i32>} : memref<8x128xf32, #tpu.memory_space<vmem>>, vector<8x128xf32>,
      %c0_123 = arith.constant 0 : index
      %c0_124 = arith.constant 0 : index
      %296 = vector.load %arg8[%c0_123, %c0_124] : memref<8x128xf32, #tpu.memory_space<vmem>>, vector<8x128xf32>
      tpu.vector_store %arg8[%c0_123, %c0_124], %294 {strides = array<i32>} : memref<8x128xf32, #tpu.memory_space<vmem>>, vector<8x128xf32>,
    } else {
    }
    %c0 = arith.constant 0 : index
    %c0_1 = arith.constant 0 : index
    %3 = vector.load %arg2[%c0, %c0_1] : memref<128x512xbf16, #tpu.memory_space<vmem>>, vector<128x512xbf16>
    %c0_2 = arith.constant 0 : index
    %c0_3 = arith.constant 0 : index
    %4 = vector.load %arg3[%c0_2, %c0_3] : memref<256x512xbf16, #tpu.memory_space<vmem>>, vector<256x512xbf16>
    %c0_4 = arith.constant 0 : index
    %c0_5 = arith.constant 0 : index
    %5 = vector.load %arg4[%c0_4, %c0_5] : memref<1x512xf32, #tpu.memory_space<vmem>>, vector<1x512xf32>
    %6 = vector.shape_cast %5 : vector<1x512xf32> to vector<1x512xf32>
    %7 = vector.broadcast %6 : vector<1x512xf32> to vector<8x512xf32>
    %c0_i32_6 = arith.constant 0 : i32
    %8 = arith.index_cast %c0_i32_6 : i32 to index
    %c0_7 = arith.constant 0 : index
    %c0_8 = arith.constant 0 : index
    %9 = vector.load %arg1[%8, %c0_7, %c0_8] : memref<4x8x512xf32, #tpu.memory_space<vmem>>, vector<1x8x512xf32>
    %10 = vector.shape_cast %9 : vector<1x8x512xf32> to vector<8x512xf32>
    %c0_9 = arith.constant 0 : index
    %c0_10 = arith.constant 0 : index
    %11 = vector.load %arg6[%c0_9, %c0_10] : memref<8x256xbf16, #tpu.memory_space<vmem>>, vector<8x128xbf16>
    %cst = arith.constant dense<0.000000e+00> : vector<8x512xf32>
    %12 = tpu.matmul %11, %3, %cst {dimension_numbers = #tpu.dot_dimension_numbers<[1], [0], [0], [1], [0, 0, 1, 1], [], []>} : vector<8x128xbf16>, vector<128x512xbf16>, vector<8x512xf32> -> vector<8x512xf32>
    %13 = arith.addf %10, %12 : vector<8x512xf32>
    %c0_11 = arith.constant 0 : index
    %c0_12 = arith.constant 0 : index
    %14 = vector.load %arg7[%c0_11, %c0_12] : memref<8x128xf32, #tpu.memory_space<vmem>>, vector<8x128xf32>
    %15 = vector.extract_strided_slice %13 {offsets = [0, 0], sizes = [8, 128], strides = [1, 1]} : vector<8x512xf32> to vector<8x128xf32>
    %16 = arith.negf %15 : vector<8x128xf32>
    %17 = math.exp %16 : vector<8x128xf32>
    %cst_13 = arith.constant 1.000000e+00 : f32
    %18 = vector.broadcast %cst_13 : f32 to vector<8x128xf32>
    %19 = arith.addf %18, %17 : vector<8x128xf32>
    %20 = arith.divf %18, %19 : vector<8x128xf32>
    %21 = vector.extract_strided_slice %13 {offsets = [0, 128], sizes = [8, 128], strides = [1, 1]} : vector<8x512xf32> to vector<8x128xf32>
    %22 = arith.negf %21 : vector<8x128xf32>
    %23 = math.exp %22 : vector<8x128xf32>
    %cst_14 = arith.constant 1.000000e+00 : f32
    %24 = vector.broadcast %cst_14 : f32 to vector<8x128xf32>
    %25 = arith.addf %24, %23 : vector<8x128xf32>
    %26 = arith.divf %24, %25 : vector<8x128xf32>
    %27 = vector.extract_strided_slice %13 {offsets = [0, 256], sizes = [8, 128], strides = [1, 1]} : vector<8x512xf32> to vector<8x128xf32>
    %28 = math.tanh %27 : vector<8x128xf32>
    %29 = vector.extract_strided_slice %13 {offsets = [0, 384], sizes = [8, 128], strides = [1, 1]} : vector<8x512xf32> to vector<8x128xf32>
    %30 = arith.negf %29 : vector<8x128xf32>
    %31 = math.exp %30 : vector<8x128xf32>
    %cst_15 = arith.constant 1.000000e+00 : f32
    %32 = vector.broadcast %cst_15 : f32 to vector<8x128xf32>
    %33 = arith.addf %32, %31 : vector<8x128xf32>
    %34 = arith.divf %32, %33 : vector<8x128xf32>
    %35 = arith.mulf %26, %14 : vector<8x128xf32>
    %36 = arith.mulf %20, %28 : vector<8x128xf32>
    %37 = arith.addf %35, %36 : vector<8x128xf32>
    %38 = math.tanh %37 : vector<8x128xf32>
    %39 = arith.mulf %34, %38 : vector<8x128xf32>
    %c0_16 = arith.constant 0 : index
    %c0_17 = arith.constant 0 : index
    %40 = vector.load %arg7[%c0_16, %c0_17] : memref<8x128xf32, #tpu.memory_space<vmem>>, vector<8x128xf32>
    tpu.vector_store %arg7[%c0_16, %c0_17], %37 {strides = array<i32>} : memref<8x128xf32, #tpu.memory_space<vmem>>, vector<8x128xf32>,
    %41 = arith.truncf %39 : vector<8x128xf32> to vector<8x128xbf16>
    %c0_18 = arith.constant 0 : index
    %c0_19 = arith.constant 0 : index
    %42 = vector.load %arg6[%c0_18, %c0_19] : memref<8x256xbf16, #tpu.memory_space<vmem>>, vector<8x128xbf16>
    tpu.vector_store %arg6[%c0_18, %c0_19], %41 {strides = array<i32>} : memref<8x256xbf16, #tpu.memory_space<vmem>>, vector<8x128xbf16>,
    %c0_20 = arith.constant 0 : index
    %c0_21 = arith.constant 0 : index
    %43 = vector.load %arg6[%c0_20, %c0_21] : memref<8x256xbf16, #tpu.memory_space<vmem>>, vector<8x256xbf16>
    %cst_22 = arith.constant dense<0.000000e+00> : vector<8x512xf32>
    %44 = tpu.matmul %43, %4, %cst_22 {dimension_numbers = #tpu.dot_dimension_numbers<[1], [0], [0], [1], [0, 0, 1, 1], [], []>} : vector<8x256xbf16>, vector<256x512xbf16>, vector<8x512xf32> -> vector<8x512xf32>
    %45 = arith.addf %44, %7 : vector<8x512xf32>
    %c0_23 = arith.constant 0 : index
    %c0_24 = arith.constant 0 : index
    %46 = vector.load %arg8[%c0_23, %c0_24] : memref<8x128xf32, #tpu.memory_space<vmem>>, vector<8x128xf32>
    %47 = vector.extract_strided_slice %45 {offsets = [0, 0], sizes = [8, 128], strides = [1, 1]} : vector<8x512xf32> to vector<8x128xf32>
    %48 = arith.negf %47 : vector<8x128xf32>
    %49 = math.exp %48 : vector<8x128xf32>
    %cst_25 = arith.constant 1.000000e+00 : f32
    %50 = vector.broadcast %cst_25 : f32 to vector<8x128xf32>
    %51 = arith.addf %50, %49 : vector<8x128xf32>
    %52 = arith.divf %50, %51 : vector<8x128xf32>
    %53 = vector.extract_strided_slice %45 {offsets = [0, 128], sizes = [8, 128], strides = [1, 1]} : vector<8x512xf32> to vector<8x128xf32>
    %54 = arith.negf %53 : vector<8x128xf32>
    %55 = math.exp %54 : vector<8x128xf32>
    %cst_26 = arith.constant 1.000000e+00 : f32
    %56 = vector.broadcast %cst_26 : f32 to vector<8x128xf32>
    %57 = arith.addf %56, %55 : vector<8x128xf32>
    %58 = arith.divf %56, %57 : vector<8x128xf32>
    %59 = vector.extract_strided_slice %45 {offsets = [0, 256], sizes = [8, 128], strides = [1, 1]} : vector<8x512xf32> to vector<8x128xf32>
    %60 = math.tanh %59 : vector<8x128xf32>
    %61 = vector.extract_strided_slice %45 {offsets = [0, 384], sizes = [8, 128], strides = [1, 1]} : vector<8x512xf32> to vector<8x128xf32>
    %62 = arith.negf %61 : vector<8x128xf32>
    %63 = math.exp %62 : vector<8x128xf32>
    %cst_27 = arith.constant 1.000000e+00 : f32
    %64 = vector.broadcast %cst_27 : f32 to vector<8x128xf32>
    %65 = arith.addf %64, %63 : vector<8x128xf32>
    %66 = arith.divf %64, %65 : vector<8x128xf32>
    %67 = arith.mulf %58, %46 : vector<8x128xf32>
    %68 = arith.mulf %52, %60 : vector<8x128xf32>
    %69 = arith.addf %67, %68 : vector<8x128xf32>
    %70 = math.tanh %69 : vector<8x128xf32>
    %71 = arith.mulf %66, %70 : vector<8x128xf32>
    %c0_28 = arith.constant 0 : index
    %c0_29 = arith.constant 0 : index
    %72 = vector.load %arg8[%c0_28, %c0_29] : memref<8x128xf32, #tpu.memory_space<vmem>>, vector<8x128xf32>
    tpu.vector_store %arg8[%c0_28, %c0_29], %69 {strides = array<i32>} : memref<8x128xf32, #tpu.memory_space<vmem>>, vector<8x128xf32>,
    %73 = arith.truncf %71 : vector<8x128xf32> to vector<8x128xbf16>
    %c0_30 = arith.constant 0 : index
    %c128 = arith.constant 128 : index
    %74 = vector.load %arg6[%c0_30, %c128] : memref<8x256xbf16, #tpu.memory_space<vmem>>, vector<8x128xbf16>
    tpu.vector_store %arg6[%c0_30, %c128], %73 {strides = array<i32>} : memref<8x256xbf16, #tpu.memory_space<vmem>>, vector<8x128xbf16>,
    %75 = arith.index_cast %c0_i32_6 : i32 to index
    %c0_31 = arith.constant 0 : index
    %c0_32 = arith.constant 0 : index
    %76 = vector.load %arg5[%75, %c0_31, %c0_32] : memref<4x8x128xf32, #tpu.memory_space<vmem>>, vector<1x8x128xf32>
    %77 = vector.shape_cast %76 : vector<1x8x128xf32> to vector<8x128xf32>
    %78 = vector.shape_cast %71 : vector<8x128xf32> to vector<1x8x128xf32>
    tpu.vector_store %arg5[%75, %c0_31, %c0_32], %78 {strides = array<i32>} : memref<4x8x128xf32, #tpu.memory_space<vmem>>, vector<1x8x128xf32>,
    %c1_i32 = arith.constant 1 : i32
    %79 = arith.index_cast %c1_i32 : i32 to index
    %c0_33 = arith.constant 0 : index
    %c0_34 = arith.constant 0 : index
    %80 = vector.load %arg1[%79, %c0_33, %c0_34] : memref<4x8x512xf32, #tpu.memory_space<vmem>>, vector<1x8x512xf32>
    %81 = vector.shape_cast %80 : vector<1x8x512xf32> to vector<8x512xf32>
    %c0_35 = arith.constant 0 : index
    %c0_36 = arith.constant 0 : index
    %82 = vector.load %arg6[%c0_35, %c0_36] : memref<8x256xbf16, #tpu.memory_space<vmem>>, vector<8x128xbf16>
    %cst_37 = arith.constant dense<0.000000e+00> : vector<8x512xf32>
    %83 = tpu.matmul %82, %3, %cst_37 {dimension_numbers = #tpu.dot_dimension_numbers<[1], [0], [0], [1], [0, 0, 1, 1], [], []>} : vector<8x128xbf16>, vector<128x512xbf16>, vector<8x512xf32> -> vector<8x512xf32>
    %84 = arith.addf %81, %83 : vector<8x512xf32>
    %c0_38 = arith.constant 0 : index
    %c0_39 = arith.constant 0 : index
    %85 = vector.load %arg7[%c0_38, %c0_39] : memref<8x128xf32, #tpu.memory_space<vmem>>, vector<8x128xf32>
    %86 = vector.extract_strided_slice %84 {offsets = [0, 0], sizes = [8, 128], strides = [1, 1]} : vector<8x512xf32> to vector<8x128xf32>
    %87 = arith.negf %86 : vector<8x128xf32>
    %88 = math.exp %87 : vector<8x128xf32>
    %cst_40 = arith.constant 1.000000e+00 : f32
    %89 = vector.broadcast %cst_40 : f32 to vector<8x128xf32>
    %90 = arith.addf %89, %88 : vector<8x128xf32>
    %91 = arith.divf %89, %90 : vector<8x128xf32>
    %92 = vector.extract_strided_slice %84 {offsets = [0, 128], sizes = [8, 128], strides = [1, 1]} : vector<8x512xf32> to vector<8x128xf32>
    %93 = arith.negf %92 : vector<8x128xf32>
    %94 = math.exp %93 : vector<8x128xf32>
    %cst_41 = arith.constant 1.000000e+00 : f32
    %95 = vector.broadcast %cst_41 : f32 to vector<8x128xf32>
    %96 = arith.addf %95, %94 : vector<8x128xf32>
    %97 = arith.divf %95, %96 : vector<8x128xf32>
    %98 = vector.extract_strided_slice %84 {offsets = [0, 256], sizes = [8, 128], strides = [1, 1]} : vector<8x512xf32> to vector<8x128xf32>
    %99 = math.tanh %98 : vector<8x128xf32>
    %100 = vector.extract_strided_slice %84 {offsets = [0, 384], sizes = [8, 128], strides = [1, 1]} : vector<8x512xf32> to vector<8x128xf32>
    %101 = arith.negf %100 : vector<8x128xf32>
    %102 = math.exp %101 : vector<8x128xf32>
    %cst_42 = arith.constant 1.000000e+00 : f32
    %103 = vector.broadcast %cst_42 : f32 to vector<8x128xf32>
    %104 = arith.addf %103, %102 : vector<8x128xf32>
    %105 = arith.divf %103, %104 : vector<8x128xf32>
    %106 = arith.mulf %97, %85 : vector<8x128xf32>
    %107 = arith.mulf %91, %99 : vector<8x128xf32>
    %108 = arith.addf %106, %107 : vector<8x128xf32>
    %109 = math.tanh %108 : vector<8x128xf32>
    %110 = arith.mulf %105, %109 : vector<8x128xf32>
    %c0_43 = arith.constant 0 : index
    %c0_44 = arith.constant 0 : index
    %111 = vector.load %arg7[%c0_43, %c0_44] : memref<8x128xf32, #tpu.memory_space<vmem>>, vector<8x128xf32>
    tpu.vector_store %arg7[%c0_43, %c0_44], %108 {strides = array<i32>} : memref<8x128xf32, #tpu.memory_space<vmem>>, vector<8x128xf32>,
    %112 = arith.truncf %110 : vector<8x128xf32> to vector<8x128xbf16>
    %c0_45 = arith.constant 0 : index
    %c0_46 = arith.constant 0 : index
    %113 = vector.load %arg6[%c0_45, %c0_46] : memref<8x256xbf16, #tpu.memory_space<vmem>>, vector<8x128xbf16>
    tpu.vector_store %arg6[%c0_45, %c0_46], %112 {strides = array<i32>} : memref<8x256xbf16, #tpu.memory_space<vmem>>, vector<8x128xbf16>,
    %c0_47 = arith.constant 0 : index
    %c0_48 = arith.constant 0 : index
    %114 = vector.load %arg6[%c0_47, %c0_48] : memref<8x256xbf16, #tpu.memory_space<vmem>>, vector<8x256xbf16>
    %cst_49 = arith.constant dense<0.000000e+00> : vector<8x512xf32>
    %115 = tpu.matmul %114, %4, %cst_49 {dimension_numbers = #tpu.dot_dimension_numbers<[1], [0], [0], [1], [0, 0, 1, 1], [], []>} : vector<8x256xbf16>, vector<256x512xbf16>, vector<8x512xf32> -> vector<8x512xf32>
    %116 = arith.addf %115, %7 : vector<8x512xf32>
    %c0_50 = arith.constant 0 : index
    %c0_51 = arith.constant 0 : index
    %117 = vector.load %arg8[%c0_50, %c0_51] : memref<8x128xf32, #tpu.memory_space<vmem>>, vector<8x128xf32>
    %118 = vector.extract_strided_slice %116 {offsets = [0, 0], sizes = [8, 128], strides = [1, 1]} : vector<8x512xf32> to vector<8x128xf32>
    %119 = arith.negf %118 : vector<8x128xf32>
    %120 = math.exp %119 : vector<8x128xf32>
    %cst_52 = arith.constant 1.000000e+00 : f32
    %121 = vector.broadcast %cst_52 : f32 to vector<8x128xf32>
    %122 = arith.addf %121, %120 : vector<8x128xf32>
    %123 = arith.divf %121, %122 : vector<8x128xf32>
    %124 = vector.extract_strided_slice %116 {offsets = [0, 128], sizes = [8, 128], strides = [1, 1]} : vector<8x512xf32> to vector<8x128xf32>
    %125 = arith.negf %124 : vector<8x128xf32>
    %126 = math.exp %125 : vector<8x128xf32>
    %cst_53 = arith.constant 1.000000e+00 : f32
    %127 = vector.broadcast %cst_53 : f32 to vector<8x128xf32>
    %128 = arith.addf %127, %126 : vector<8x128xf32>
    %129 = arith.divf %127, %128 : vector<8x128xf32>
    %130 = vector.extract_strided_slice %116 {offsets = [0, 256], sizes = [8, 128], strides = [1, 1]} : vector<8x512xf32> to vector<8x128xf32>
    %131 = math.tanh %130 : vector<8x128xf32>
    %132 = vector.extract_strided_slice %116 {offsets = [0, 384], sizes = [8, 128], strides = [1, 1]} : vector<8x512xf32> to vector<8x128xf32>
    %133 = arith.negf %132 : vector<8x128xf32>
    %134 = math.exp %133 : vector<8x128xf32>
    %cst_54 = arith.constant 1.000000e+00 : f32
    %135 = vector.broadcast %cst_54 : f32 to vector<8x128xf32>
    %136 = arith.addf %135, %134 : vector<8x128xf32>
    %137 = arith.divf %135, %136 : vector<8x128xf32>
    %138 = arith.mulf %129, %117 : vector<8x128xf32>
    %139 = arith.mulf %123, %131 : vector<8x128xf32>
    %140 = arith.addf %138, %139 : vector<8x128xf32>
    %141 = math.tanh %140 : vector<8x128xf32>
    %142 = arith.mulf %137, %141 : vector<8x128xf32>
    %c0_55 = arith.constant 0 : index
    %c0_56 = arith.constant 0 : index
    %143 = vector.load %arg8[%c0_55, %c0_56] : memref<8x128xf32, #tpu.memory_space<vmem>>, vector<8x128xf32>
    tpu.vector_store %arg8[%c0_55, %c0_56], %140 {strides = array<i32>} : memref<8x128xf32, #tpu.memory_space<vmem>>, vector<8x128xf32>,
    %144 = arith.truncf %142 : vector<8x128xf32> to vector<8x128xbf16>
    %c0_57 = arith.constant 0 : index
    %c128_58 = arith.constant 128 : index
    %145 = vector.load %arg6[%c0_57, %c128_58] : memref<8x256xbf16, #tpu.memory_space<vmem>>, vector<8x128xbf16>
    tpu.vector_store %arg6[%c0_57, %c128_58], %144 {strides = array<i32>} : memref<8x256xbf16, #tpu.memory_space<vmem>>, vector<8x128xbf16>,
    %146 = arith.index_cast %c1_i32 : i32 to index
    %c0_59 = arith.constant 0 : index
    %c0_60 = arith.constant 0 : index
    %147 = vector.load %arg5[%146, %c0_59, %c0_60] : memref<4x8x128xf32, #tpu.memory_space<vmem>>, vector<1x8x128xf32>
    %148 = vector.shape_cast %147 : vector<1x8x128xf32> to vector<8x128xf32>
    %149 = vector.shape_cast %142 : vector<8x128xf32> to vector<1x8x128xf32>
    tpu.vector_store %arg5[%146, %c0_59, %c0_60], %149 {strides = array<i32>} : memref<4x8x128xf32, #tpu.memory_space<vmem>>, vector<1x8x128xf32>,
    %c2_i32 = arith.constant 2 : i32
    %150 = arith.index_cast %c2_i32 : i32 to index
    %c0_61 = arith.constant 0 : index
    %c0_62 = arith.constant 0 : index
    %151 = vector.load %arg1[%150, %c0_61, %c0_62] : memref<4x8x512xf32, #tpu.memory_space<vmem>>, vector<1x8x512xf32>
    %152 = vector.shape_cast %151 : vector<1x8x512xf32> to vector<8x512xf32>
    %c0_63 = arith.constant 0 : index
    %c0_64 = arith.constant 0 : index
    %153 = vector.load %arg6[%c0_63, %c0_64] : memref<8x256xbf16, #tpu.memory_space<vmem>>, vector<8x128xbf16>
    %cst_65 = arith.constant dense<0.000000e+00> : vector<8x512xf32>
    %154 = tpu.matmul %153, %3, %cst_65 {dimension_numbers = #tpu.dot_dimension_numbers<[1], [0], [0], [1], [0, 0, 1, 1], [], []>} : vector<8x128xbf16>, vector<128x512xbf16>, vector<8x512xf32> -> vector<8x512xf32>
    %155 = arith.addf %152, %154 : vector<8x512xf32>
    %c0_66 = arith.constant 0 : index
    %c0_67 = arith.constant 0 : index
    %156 = vector.load %arg7[%c0_66, %c0_67] : memref<8x128xf32, #tpu.memory_space<vmem>>, vector<8x128xf32>
    %157 = vector.extract_strided_slice %155 {offsets = [0, 0], sizes = [8, 128], strides = [1, 1]} : vector<8x512xf32> to vector<8x128xf32>
    %158 = arith.negf %157 : vector<8x128xf32>
    %159 = math.exp %158 : vector<8x128xf32>
    %cst_68 = arith.constant 1.000000e+00 : f32
    %160 = vector.broadcast %cst_68 : f32 to vector<8x128xf32>
    %161 = arith.addf %160, %159 : vector<8x128xf32>
    %162 = arith.divf %160, %161 : vector<8x128xf32>
    %163 = vector.extract_strided_slice %155 {offsets = [0, 128], sizes = [8, 128], strides = [1, 1]} : vector<8x512xf32> to vector<8x128xf32>
    %164 = arith.negf %163 : vector<8x128xf32>
    %165 = math.exp %164 : vector<8x128xf32>
    %cst_69 = arith.constant 1.000000e+00 : f32
    %166 = vector.broadcast %cst_69 : f32 to vector<8x128xf32>
    %167 = arith.addf %166, %165 : vector<8x128xf32>
    %168 = arith.divf %166, %167 : vector<8x128xf32>
    %169 = vector.extract_strided_slice %155 {offsets = [0, 256], sizes = [8, 128], strides = [1, 1]} : vector<8x512xf32> to vector<8x128xf32>
    %170 = math.tanh %169 : vector<8x128xf32>
    %171 = vector.extract_strided_slice %155 {offsets = [0, 384], sizes = [8, 128], strides = [1, 1]} : vector<8x512xf32> to vector<8x128xf32>
    %172 = arith.negf %171 : vector<8x128xf32>
    %173 = math.exp %172 : vector<8x128xf32>
    %cst_70 = arith.constant 1.000000e+00 : f32
    %174 = vector.broadcast %cst_70 : f32 to vector<8x128xf32>
    %175 = arith.addf %174, %173 : vector<8x128xf32>
    %176 = arith.divf %174, %175 : vector<8x128xf32>
    %177 = arith.mulf %168, %156 : vector<8x128xf32>
    %178 = arith.mulf %162, %170 : vector<8x128xf32>
    %179 = arith.addf %177, %178 : vector<8x128xf32>
    %180 = math.tanh %179 : vector<8x128xf32>
    %181 = arith.mulf %176, %180 : vector<8x128xf32>
    %c0_71 = arith.constant 0 : index
    %c0_72 = arith.constant 0 : index
    %182 = vector.load %arg7[%c0_71, %c0_72] : memref<8x128xf32, #tpu.memory_space<vmem>>, vector<8x128xf32>
    tpu.vector_store %arg7[%c0_71, %c0_72], %179 {strides = array<i32>} : memref<8x128xf32, #tpu.memory_space<vmem>>, vector<8x128xf32>,
    %183 = arith.truncf %181 : vector<8x128xf32> to vector<8x128xbf16>
    %c0_73 = arith.constant 0 : index
    %c0_74 = arith.constant 0 : index
    %184 = vector.load %arg6[%c0_73, %c0_74] : memref<8x256xbf16, #tpu.memory_space<vmem>>, vector<8x128xbf16>
    tpu.vector_store %arg6[%c0_73, %c0_74], %183 {strides = array<i32>} : memref<8x256xbf16, #tpu.memory_space<vmem>>, vector<8x128xbf16>,
    %c0_75 = arith.constant 0 : index
    %c0_76 = arith.constant 0 : index
    %185 = vector.load %arg6[%c0_75, %c0_76] : memref<8x256xbf16, #tpu.memory_space<vmem>>, vector<8x256xbf16>
    %cst_77 = arith.constant dense<0.000000e+00> : vector<8x512xf32>
    %186 = tpu.matmul %185, %4, %cst_77 {dimension_numbers = #tpu.dot_dimension_numbers<[1], [0], [0], [1], [0, 0, 1, 1], [], []>} : vector<8x256xbf16>, vector<256x512xbf16>, vector<8x512xf32> -> vector<8x512xf32>
    %187 = arith.addf %186, %7 : vector<8x512xf32>
    %c0_78 = arith.constant 0 : index
    %c0_79 = arith.constant 0 : index
    %188 = vector.load %arg8[%c0_78, %c0_79] : memref<8x128xf32, #tpu.memory_space<vmem>>, vector<8x128xf32>
    %189 = vector.extract_strided_slice %187 {offsets = [0, 0], sizes = [8, 128], strides = [1, 1]} : vector<8x512xf32> to vector<8x128xf32>
    %190 = arith.negf %189 : vector<8x128xf32>
    %191 = math.exp %190 : vector<8x128xf32>
    %cst_80 = arith.constant 1.000000e+00 : f32
    %192 = vector.broadcast %cst_80 : f32 to vector<8x128xf32>
    %193 = arith.addf %192, %191 : vector<8x128xf32>
    %194 = arith.divf %192, %193 : vector<8x128xf32>
    %195 = vector.extract_strided_slice %187 {offsets = [0, 128], sizes = [8, 128], strides = [1, 1]} : vector<8x512xf32> to vector<8x128xf32>
    %196 = arith.negf %195 : vector<8x128xf32>
    %197 = math.exp %196 : vector<8x128xf32>
    %cst_81 = arith.constant 1.000000e+00 : f32
    %198 = vector.broadcast %cst_81 : f32 to vector<8x128xf32>
    %199 = arith.addf %198, %197 : vector<8x128xf32>
    %200 = arith.divf %198, %199 : vector<8x128xf32>
    %201 = vector.extract_strided_slice %187 {offsets = [0, 256], sizes = [8, 128], strides = [1, 1]} : vector<8x512xf32> to vector<8x128xf32>
    %202 = math.tanh %201 : vector<8x128xf32>
    %203 = vector.extract_strided_slice %187 {offsets = [0, 384], sizes = [8, 128], strides = [1, 1]} : vector<8x512xf32> to vector<8x128xf32>
    %204 = arith.negf %203 : vector<8x128xf32>
    %205 = math.exp %204 : vector<8x128xf32>
    %cst_82 = arith.constant 1.000000e+00 : f32
    %206 = vector.broadcast %cst_82 : f32 to vector<8x128xf32>
    %207 = arith.addf %206, %205 : vector<8x128xf32>
    %208 = arith.divf %206, %207 : vector<8x128xf32>
    %209 = arith.mulf %200, %188 : vector<8x128xf32>
    %210 = arith.mulf %194, %202 : vector<8x128xf32>
    %211 = arith.addf %209, %210 : vector<8x128xf32>
    %212 = math.tanh %211 : vector<8x128xf32>
    %213 = arith.mulf %208, %212 : vector<8x128xf32>
    %c0_83 = arith.constant 0 : index
    %c0_84 = arith.constant 0 : index
    %214 = vector.load %arg8[%c0_83, %c0_84] : memref<8x128xf32, #tpu.memory_space<vmem>>, vector<8x128xf32>
    tpu.vector_store %arg8[%c0_83, %c0_84], %211 {strides = array<i32>} : memref<8x128xf32, #tpu.memory_space<vmem>>, vector<8x128xf32>,
    %215 = arith.truncf %213 : vector<8x128xf32> to vector<8x128xbf16>
    %c0_85 = arith.constant 0 : index
    %c128_86 = arith.constant 128 : index
    %216 = vector.load %arg6[%c0_85, %c128_86] : memref<8x256xbf16, #tpu.memory_space<vmem>>, vector<8x128xbf16>
    tpu.vector_store %arg6[%c0_85, %c128_86], %215 {strides = array<i32>} : memref<8x256xbf16, #tpu.memory_space<vmem>>, vector<8x128xbf16>,
    %217 = arith.index_cast %c2_i32 : i32 to index
    %c0_87 = arith.constant 0 : index
    %c0_88 = arith.constant 0 : index
    %218 = vector.load %arg5[%217, %c0_87, %c0_88] : memref<4x8x128xf32, #tpu.memory_space<vmem>>, vector<1x8x128xf32>
    %219 = vector.shape_cast %218 : vector<1x8x128xf32> to vector<8x128xf32>
    %220 = vector.shape_cast %213 : vector<8x128xf32> to vector<1x8x128xf32>
    tpu.vector_store %arg5[%217, %c0_87, %c0_88], %220 {strides = array<i32>} : memref<4x8x128xf32, #tpu.memory_space<vmem>>, vector<1x8x128xf32>,
    %c3_i32 = arith.constant 3 : i32
    %221 = arith.index_cast %c3_i32 : i32 to index
    %c0_89 = arith.constant 0 : index
    %c0_90 = arith.constant 0 : index
    %222 = vector.load %arg1[%221, %c0_89, %c0_90] : memref<4x8x512xf32, #tpu.memory_space<vmem>>, vector<1x8x512xf32>
    %223 = vector.shape_cast %222 : vector<1x8x512xf32> to vector<8x512xf32>
    %c0_91 = arith.constant 0 : index
    %c0_92 = arith.constant 0 : index
    %224 = vector.load %arg6[%c0_91, %c0_92] : memref<8x256xbf16, #tpu.memory_space<vmem>>, vector<8x128xbf16>
    %cst_93 = arith.constant dense<0.000000e+00> : vector<8x512xf32>
    %225 = tpu.matmul %224, %3, %cst_93 {dimension_numbers = #tpu.dot_dimension_numbers<[1], [0], [0], [1], [0, 0, 1, 1], [], []>} : vector<8x128xbf16>, vector<128x512xbf16>, vector<8x512xf32> -> vector<8x512xf32>
    %226 = arith.addf %223, %225 : vector<8x512xf32>
    %c0_94 = arith.constant 0 : index
    %c0_95 = arith.constant 0 : index
    %227 = vector.load %arg7[%c0_94, %c0_95] : memref<8x128xf32, #tpu.memory_space<vmem>>, vector<8x128xf32>
    %228 = vector.extract_strided_slice %226 {offsets = [0, 0], sizes = [8, 128], strides = [1, 1]} : vector<8x512xf32> to vector<8x128xf32>
    %229 = arith.negf %228 : vector<8x128xf32>
    %230 = math.exp %229 : vector<8x128xf32>
    %cst_96 = arith.constant 1.000000e+00 : f32
    %231 = vector.broadcast %cst_96 : f32 to vector<8x128xf32>
    %232 = arith.addf %231, %230 : vector<8x128xf32>
    %233 = arith.divf %231, %232 : vector<8x128xf32>
    %234 = vector.extract_strided_slice %226 {offsets = [0, 128], sizes = [8, 128], strides = [1, 1]} : vector<8x512xf32> to vector<8x128xf32>
    %235 = arith.negf %234 : vector<8x128xf32>
    %236 = math.exp %235 : vector<8x128xf32>
    %cst_97 = arith.constant 1.000000e+00 : f32
    %237 = vector.broadcast %cst_97 : f32 to vector<8x128xf32>
    %238 = arith.addf %237, %236 : vector<8x128xf32>
    %239 = arith.divf %237, %238 : vector<8x128xf32>
    %240 = vector.extract_strided_slice %226 {offsets = [0, 256], sizes = [8, 128], strides = [1, 1]} : vector<8x512xf32> to vector<8x128xf32>
    %241 = math.tanh %240 : vector<8x128xf32>
    %242 = vector.extract_strided_slice %226 {offsets = [0, 384], sizes = [8, 128], strides = [1, 1]} : vector<8x512xf32> to vector<8x128xf32>
    %243 = arith.negf %242 : vector<8x128xf32>
    %244 = math.exp %243 : vector<8x128xf32>
    %cst_98 = arith.constant 1.000000e+00 : f32
    %245 = vector.broadcast %cst_98 : f32 to vector<8x128xf32>
    %246 = arith.addf %245, %244 : vector<8x128xf32>
    %247 = arith.divf %245, %246 : vector<8x128xf32>
    %248 = arith.mulf %239, %227 : vector<8x128xf32>
    %249 = arith.mulf %233, %241 : vector<8x128xf32>
    %250 = arith.addf %248, %249 : vector<8x128xf32>
    %251 = math.tanh %250 : vector<8x128xf32>
    %252 = arith.mulf %247, %251 : vector<8x128xf32>
    %c0_99 = arith.constant 0 : index
    %c0_100 = arith.constant 0 : index
    %253 = vector.load %arg7[%c0_99, %c0_100] : memref<8x128xf32, #tpu.memory_space<vmem>>, vector<8x128xf32>
    tpu.vector_store %arg7[%c0_99, %c0_100], %250 {strides = array<i32>} : memref<8x128xf32, #tpu.memory_space<vmem>>, vector<8x128xf32>,
    %254 = arith.truncf %252 : vector<8x128xf32> to vector<8x128xbf16>
    %c0_101 = arith.constant 0 : index
    %c0_102 = arith.constant 0 : index
    %255 = vector.load %arg6[%c0_101, %c0_102] : memref<8x256xbf16, #tpu.memory_space<vmem>>, vector<8x128xbf16>
    tpu.vector_store %arg6[%c0_101, %c0_102], %254 {strides = array<i32>} : memref<8x256xbf16, #tpu.memory_space<vmem>>, vector<8x128xbf16>,
    %c0_103 = arith.constant 0 : index
    %c0_104 = arith.constant 0 : index
    %256 = vector.load %arg6[%c0_103, %c0_104] : memref<8x256xbf16, #tpu.memory_space<vmem>>, vector<8x256xbf16>
    %cst_105 = arith.constant dense<0.000000e+00> : vector<8x512xf32>
    %257 = tpu.matmul %256, %4, %cst_105 {dimension_numbers = #tpu.dot_dimension_numbers<[1], [0], [0], [1], [0, 0, 1, 1], [], []>} : vector<8x256xbf16>, vector<256x512xbf16>, vector<8x512xf32> -> vector<8x512xf32>
    %258 = arith.addf %257, %7 : vector<8x512xf32>
    %c0_106 = arith.constant 0 : index
    %c0_107 = arith.constant 0 : index
    %259 = vector.load %arg8[%c0_106, %c0_107] : memref<8x128xf32, #tpu.memory_space<vmem>>, vector<8x128xf32>
    %260 = vector.extract_strided_slice %258 {offsets = [0, 0], sizes = [8, 128], strides = [1, 1]} : vector<8x512xf32> to vector<8x128xf32>
    %261 = arith.negf %260 : vector<8x128xf32>
    %262 = math.exp %261 : vector<8x128xf32>
    %cst_108 = arith.constant 1.000000e+00 : f32
    %263 = vector.broadcast %cst_108 : f32 to vector<8x128xf32>
    %264 = arith.addf %263, %262 : vector<8x128xf32>
    %265 = arith.divf %263, %264 : vector<8x128xf32>
    %266 = vector.extract_strided_slice %258 {offsets = [0, 128], sizes = [8, 128], strides = [1, 1]} : vector<8x512xf32> to vector<8x128xf32>
    %267 = arith.negf %266 : vector<8x128xf32>
    %268 = math.exp %267 : vector<8x128xf32>
    %cst_109 = arith.constant 1.000000e+00 : f32
    %269 = vector.broadcast %cst_109 : f32 to vector<8x128xf32>
    %270 = arith.addf %269, %268 : vector<8x128xf32>
    %271 = arith.divf %269, %270 : vector<8x128xf32>
    %272 = vector.extract_strided_slice %258 {offsets = [0, 256], sizes = [8, 128], strides = [1, 1]} : vector<8x512xf32> to vector<8x128xf32>
    %273 = math.tanh %272 : vector<8x128xf32>
    %274 = vector.extract_strided_slice %258 {offsets = [0, 384], sizes = [8, 128], strides = [1, 1]} : vector<8x512xf32> to vector<8x128xf32>
    %275 = arith.negf %274 : vector<8x128xf32>
    %276 = math.exp %275 : vector<8x128xf32>
    %cst_110 = arith.constant 1.000000e+00 : f32
    %277 = vector.broadcast %cst_110 : f32 to vector<8x128xf32>
    %278 = arith.addf %277, %276 : vector<8x128xf32>
    %279 = arith.divf %277, %278 : vector<8x128xf32>
    %280 = arith.mulf %271, %259 : vector<8x128xf32>
    %281 = arith.mulf %265, %273 : vector<8x128xf32>
    %282 = arith.addf %280, %281 : vector<8x128xf32>
    %283 = math.tanh %282 : vector<8x128xf32>
    %284 = arith.mulf %279, %283 : vector<8x128xf32>
    %c0_111 = arith.constant 0 : index
    %c0_112 = arith.constant 0 : index
    %285 = vector.load %arg8[%c0_111, %c0_112] : memref<8x128xf32, #tpu.memory_space<vmem>>, vector<8x128xf32>
    tpu.vector_store %arg8[%c0_111, %c0_112], %282 {strides = array<i32>} : memref<8x128xf32, #tpu.memory_space<vmem>>, vector<8x128xf32>,
    %286 = arith.truncf %284 : vector<8x128xf32> to vector<8x128xbf16>
    %c0_113 = arith.constant 0 : index
    %c128_114 = arith.constant 128 : index
    %287 = vector.load %arg6[%c0_113, %c128_114] : memref<8x256xbf16, #tpu.memory_space<vmem>>, vector<8x128xbf16>
    tpu.vector_store %arg6[%c0_113, %c128_114], %286 {strides = array<i32>} : memref<8x256xbf16, #tpu.memory_space<vmem>>, vector<8x128xbf16>,
    %288 = arith.index_cast %c3_i32 : i32 to index
    %c0_115 = arith.constant 0 : index
    %c0_116 = arith.constant 0 : index
    %289 = vector.load %arg5[%288, %c0_115, %c0_116] : memref<4x8x128xf32, #tpu.memory_space<vmem>>, vector<1x8x128xf32>
    %290 = vector.shape_cast %289 : vector<1x8x128xf32> to vector<8x128xf32>
    %291 = vector.shape_cast %284 : vector<8x128xf32> to vector<1x8x128xf32>
    tpu.vector_store %arg5[%288, %c0_115, %c0_116], %291 {strides = array<i32>} : memref<4x8x128xf32, #tpu.memory_space<vmem>>, vector<1x8x128xf32>,
    %c4_i32 = arith.constant 4 : i32
    return
  }
  func.func @transform_0(%arg0: i32) -> (i32, i32, i32) {
    %c0_i32 = arith.constant 0 : i32
    %c0_i32_0 = arith.constant 0 : i32
    %c0_i32_1 = arith.constant 0 : i32
    return %arg0, %c0_i32, %c0_i32_0 : i32, i32, i32
  }
  func.func @transform_1(%arg0: i32) -> (i32, i32) {
    %c0_i32 = arith.constant 0 : i32
    %c0_i32_0 = arith.constant 0 : i32
    %c0_i32_1 = arith.constant 0 : i32
    return %c0_i32, %c0_i32_0 : i32, i32
  }
  func.func @transform_2(%arg0: i32) -> (i32, i32) {
    %c0_i32 = arith.constant 0 : i32
    %c0_i32_0 = arith.constant 0 : i32
    %c0_i32_1 = arith.constant 0 : i32
    return %c0_i32, %c0_i32_0 : i32, i32
  }
  func.func @transform_3(%arg0: i32) -> (i32, i32) {
    %c0_i32 = arith.constant 0 : i32
    %c0_i32_0 = arith.constant 0 : i32
    %c0_i32_1 = arith.constant 0 : i32
    return %c0_i32, %c0_i32_0 : i32, i32
  }
  func.func @transform_4(%arg0: i32) -> (i32, i32, i32) {
    %c0_i32 = arith.constant 0 : i32
    %c0_i32_0 = arith.constant 0 : i32
    %c0_i32_1 = arith.constant 0 : i32
    return %arg0, %c0_i32, %c0_i32_0 : i32, i32, i32
  }
}

</mosaic_0001>

<llo_original>
// kernel: tpu_custom_call.1
$region0: #{tpu_custom_call.1}
  #allocation0 [shape = 'u32[]', space=smem, size = 0x4, offset = 0x4, fixed_abs, tag = 'smem constant byte address 0x4 - core index']
  #allocation1 [shape = 'u32[144,128]{1,0:T(1,128)}', space=vmem, size = 0x12000, scoped, tag = 'internal scratch']
  #allocation2 [shape = 'bf16[8,256]{1,0:T(8,128)(2,1)}', space=vmem, size = 0x1000, scoped, tag = 'scratch operand']
  #allocation3 [shape = 'f32[8,128]{1,0:T(8,128)}', space=vmem, size = 0x1000, scoped, tag = 'scratch operand']
  #allocation4 [shape = 'f32[8,128]{1,0:T(8,128)}', space=vmem, size = 0x1000, scoped, tag = 'scratch operand']
  %s0 = inlined_call_operand.hbm [shape: f32[8,8,512], index: 0, kind: input, shape index: {}]
  %s1 = inlined_call_operand.hbm [shape: bf16[128,512], index: 1, kind: input, shape index: {}]
  %s2 = inlined_call_operand.hbm [shape: bf16[256,512], index: 2, kind: input, shape index: {}]
  %s3 = inlined_call_operand.vmem [shape: f32[1,512], index: 3, kind: input, shape index: {}]
  %s4 = inlined_call_operand.hbm [shape: f32[8,8,128], index: 4, kind: output, shape index: {}]
  %s5 = sld [smem:[#allocation0]]
  $region65: #{tpu_custom_call.1} parent=0
    _
  %s7 = ssub.s32 1, %s5
  %s8 = scalar_select 0, %s7, %s5
  $region1: #{tpu_custom_call.1} parent=0
    #allocation5 [shape = 'u8[131072]{0}', space=vmem, size = 0x20000, scoped, tag = 'input window, operand 0']
    #allocation6 [shape = 's32[2]{0}', space=sflag, size = 0x8, scoped, tag = 'scoped memory for tpu_custom_call.1']
    #allocation7 [shape = 's32[2]{0}', space=sflag, size = 0x8, scoped, tag = 'scoped memory for tpu_custom_call.1']
    #allocation8 [shape = 'u8[131072]{0}', space=vmem, size = 0x20000, scoped, tag = 'input window, operand 1, single buffered']
    #allocation9 [shape = 's32[1]{0}', space=sflag, size = 0x4, scoped, tag = 'scoped memory for tpu_custom_call.1']
    #allocation10 [shape = 'u8[262144]{0}', space=vmem, size = 0x40000, scoped, tag = 'input window, operand 2, single buffered']
    #allocation11 [shape = 'u8[32768]{0}', space=vmem, size = 0x8000, scoped, tag = 'output window, operand 0']
    %9 = vsyncpa [#allocation6], 0
    %s10 = scalar_lea.sflag [#allocation6], 1
    %11 = vsyncpa %s10, 0
    %12 = vsyncpa [#allocation9], 0
    %13 = vsyncpa [#allocation7], 0
    %s14 = scalar_lea.sflag [#allocation7], 1
    %15 = vsyncpa %s14, 0
    loop: start=0, step=1, limit=4
    $region2: #{tpu_custom_call.1} parent=1 // loop_pre_header
      _
    $region3: #{tpu_custom_call.1} parent=1 // loop_header
      %s17 = sphi 0, %s21
      %p18 = scmp.ge.s32.totalorder %s17, 4
      %s27 = sphi 0, %s29
      %s30 = sphi 0, %s27
      %s31 = sphi 0, %s30
      %s47 = sphi 0, %s31
      %s51 = sphi 0, %s51
      %s53 = sphi 0, %s51
      %s54 = sphi 0, %s53
      %s68 = sphi 0, %s54
      %s72 = sphi 0, %s72
      %s74 = sphi 0, %s72
      %s75 = sphi 0, %s74
      %s89 = sphi 0, %s75
      %s93 = sphi 0, %s93
      %s95 = sphi 0, %s93
      %s96 = sphi 0, %s95
      %s110 = sphi 0, %s96
      %s116 = sphi 0, %s118
      %s119 = sphi 0, %s116
      %s120 = sphi 0, %s119
      %s136 = sphi 0, %s120
    $region4: #{tpu_custom_call.1} parent=1 // loop_header_branch
      %20 = sbr.rel (%p18) target = $region8
    $region5: #{tpu_custom_call.1} parent=1 // loop_body
      %s22 = ssub.s32 %s17, 1
      %s23 = ssub.s32 %s17, 2
      %s24 = sadd.s32 %s17, 1
      %s25 = ssub.s32 %s17, %s24
      %p26 = scmp.eq.s32.totalorder %s25, 0
      %s28 = sadd.s32 %s27, 1
      %s29 = scalar_select %p26, %s27, %s28
      %p32 = pneg %p26
      %p33 = scmp.eq.s32.totalorder %s17, 1
      %p34 = por %p32, %p33
      %p35 = scmp.ne.s32.totalorder %s27, %s30
      %p36 = scmp.eq.s32.totalorder %s17, 0
      %p37 = por %p35, %p36
      %p38 = scmp.ne.s32.totalorder %s27, %s30
      %p39 = scmp.eq.s32.totalorder %s22, 1
      %p40 = por %p38, %p39
      %p41 = scmp.ne.s32.totalorder %s30, %s31
      %p42 = scmp.eq.s32.totalorder %s22, 0
      %p43 = por %p41, %p42
      %p44 = scmp.ne.s32.totalorder %s30, %s31
      %p45 = scmp.eq.s32.totalorder %s23, 1
      %p46 = por %p44, %p45
      %p48 = scmp.ne.s32.totalorder %s31, %s47
      %p49 = scmp.eq.s32.totalorder %s23, 0
      %p50 = por %p48, %p49
      %s52 = sadd.s32 %s51, 1
      %p55 = scmp.eq.s32.totalorder %s17, 1
      %p56 = scmp.ne.s32.totalorder %s51, %s53
      %p57 = scmp.eq.s32.totalorder %s17, 0
      %p58 = por %p56, %p57
      %p59 = scmp.ne.s32.totalorder %s51, %s53
      %p60 = scmp.eq.s32.totalorder %s22, 1
      %p61 = por %p59, %p60
      %p62 = scmp.ne.s32.totalorder %s53, %s54
      %p63 = scmp.eq.s32.totalorder %s22, 0
      %p64 = por %p62, %p63
      %p65 = scmp.ne.s32.totalorder %s53, %s54
      %p66 = scmp.eq.s32.totalorder %s23, 1
      %p67 = por %p65, %p66
      %p69 = scmp.ne.s32.totalorder %s54, %s68
      %p70 = scmp.eq.s32.totalorder %s23, 0
      %p71 = por %p69, %p70
      %s73 = sadd.s32 %s72, 1
      %p76 = scmp.eq.s32.totalorder %s17, 1
      %p77 = scmp.ne.s32.totalorder %s72, %s74
      %p78 = scmp.eq.s32.totalorder %s17, 0
      %p79 = por %p77, %p78
      %p80 = scmp.ne.s32.totalorder %s72, %s74
      %p81 = scmp.eq.s32.totalorder %s22, 1
      %p82 = por %p80, %p81
      %p83 = scmp.ne.s32.totalorder %s74, %s75
      %p84 = scmp.eq.s32.totalorder %s22, 0
      %p85 = por %p83, %p84
      %p86 = scmp.ne.s32.totalorder %s74, %s75
      %p87 = scmp.eq.s32.totalorder %s23, 1
      %p88 = por %p86, %p87
      %p90 = scmp.ne.s32.totalorder %s75, %s89
      %p91 = scmp.eq.s32.totalorder %s23, 0
      %p92 = por %p90, %p91
      %s94 = sadd.s32 %s93, 1
      %p97 = scmp.eq.s32.totalorder %s17, 1
      %p98 = scmp.ne.s32.totalorder %s93, %s95
      %p99 = scmp.eq.s32.totalorder %s17, 0
      %p100 = por %p98, %p99
      %p101 = scmp.ne.s32.totalorder %s93, %s95
      %p102 = scmp.eq.s32.totalorder %s22, 1
      %p103 = por %p101, %p102
      %p104 = scmp.ne.s32.totalorder %s95, %s96
      %p105 = scmp.eq.s32.totalorder %s22, 0
      %p106 = por %p104, %p105
      %p107 = scmp.ne.s32.totalorder %s95, %s96
      %p108 = scmp.eq.s32.totalorder %s23, 1
      %p109 = por %p107, %p108
      %p111 = scmp.ne.s32.totalorder %s96, %s110
      %p112 = scmp.eq.s32.totalorder %s23, 0
      %p113 = por %p111, %p112
      %s114 = ssub.s32 %s17, %s24
      %p115 = scmp.eq.s32.totalorder %s114, 0
      %s117 = sadd.s32 %s116, 1
      %s118 = scalar_select %p115, %s116, %s117
      %p121 = pneg %p115
      %p122 = scmp.eq.s32.totalorder %s17, 1
      %p123 = por %p121, %p122
      %p124 = scmp.ne.s32.totalorder %s116, %s119
      %p125 = scmp.eq.s32.totalorder %s17, 0
      %p126 = por %p124, %p125
      %p127 = scmp.ne.s32.totalorder %s116, %s119
      %p128 = scmp.eq.s32.totalorder %s22, 1
      %p129 = por %p127, %p128
      %p130 = scmp.ne.s32.totalorder %s119, %s120
      %p131 = scmp.eq.s32.totalorder %s22, 0
      %p132 = por %p130, %p131
      %p133 = scmp.ne.s32.totalorder %s119, %s120
      %p134 = scmp.eq.s32.totalorder %s23, 1
      %p135 = por %p133, %p134
      %p137 = scmp.ne.s32.totalorder %s120, %s136
      %p138 = scmp.eq.s32.totalorder %s23, 0
      %p139 = por %p137, %p138
      %p140 = scmp.le.s32.totalorder 1, %s17
      %p141 = scmp.lt.s32.totalorder %s17, 3
      %p142 = pnand %p140, %p141
      %p143 = pneg %p142
      // Predicated region
      $region9: #{tpu_custom_call.1} parent=5 // pred_check
        _
      $region10: #{tpu_custom_call.1} parent=5 // pred_check_branch
        %145 = sbr.rel (%p142) target = $region12
      $region11: #{tpu_custom_call.1} parent=5 // pred_region
        %s146 = ssub.s32 %s17, 1
        // Predicated region
        $region13: #{tpu_custom_call.1} parent=11 // pred_check
          %p147 = pneg %p64
        $region14: #{tpu_custom_call.1} parent=11 // pred_check_branch
          %149 = sbr.rel (%p147) target = $region16
        $region15: #{tpu_custom_call.1} parent=11 // pred_region
          %s151 = ssub.s32 4096, 4096
          %152 = vsyncadd [#allocation9], %s151
          %s153 = sshll.u32 [#allocation8], 4
          %s154 = int_to_ptr.vmem [resolvable:$true] %s153
          %159 = dma.hbm_to_vmem [thread:$0]  %s1, 4096, %s154, [#allocation9], 256, 256, 16
        $region16: #{tpu_custom_call.1} parent=11 // pred_fallthru
          _
        // Predicated region
        $region17: #{tpu_custom_call.1} parent=11 // pred_check
          %p160 = pneg %p85
        $region18: #{tpu_custom_call.1} parent=11 // pred_check_branch
          %162 = sbr.rel (%p160) target = $region20
        $region19: #{tpu_custom_call.1} parent=11 // pred_region
          %s164 = ssub.s32 8192, 8192
          %165 = vsyncadd [#allocation9], %s164
          %s166 = sshll.u32 [#allocation10], 4
          %s167 = int_to_ptr.vmem [resolvable:$true] %s166
          %172 = dma.hbm_to_vmem [thread:$0]  %s2, 8192, %s167, [#allocation9], 256, 256, 16
        $region20: #{tpu_custom_call.1} parent=11 // pred_fallthru
          _
        // Predicated region
        $region21: #{tpu_custom_call.1} parent=11 // pred_check
          %p173 = pneg %p106
        $region22: #{tpu_custom_call.1} parent=11 // pred_check_branch
          %175 = sbr.rel (%p173) target = $region24
        $region23: #{tpu_custom_call.1} parent=11 // pred_region
          _
        $region24: #{tpu_custom_call.1} parent=11 // pred_fallthru
          _
      $region12: #{tpu_custom_call.1} parent=5 // pred_fallthru
        _
      %p176 = scmp.lt.s32.totalorder %s17, 2
      // Predicated region
      $region25: #{tpu_custom_call.1} parent=5 // pred_check
        %p177 = pneg %p176
      $region26: #{tpu_custom_call.1} parent=5 // pred_check_branch
        %179 = sbr.rel (%p177) target = $region28
      $region27: #{tpu_custom_call.1} parent=5 // pred_region
        // Predicated region
        $region29: #{tpu_custom_call.1} parent=27 // pred_check
          %p180 = pneg %p37
        $region30: #{tpu_custom_call.1} parent=27 // pred_check_branch
          %182 = sbr.rel (%p180) target = $region32
        $region31: #{tpu_custom_call.1} parent=27 // pred_region
          %s183 = sand.u32 %s27, 1
          %s184 = scalar_lea.sflag [#allocation6], %s183
          %s185 = sand.u32 %s27, 1
          %s186 = smul.addr %s185, 128
          %s187 = scalar_lea.vmem [#allocation5], %s186
          %s188 = smul.u32 4, %s17
          %s190 = ssub.s32 2048, 2048
          %191 = vsyncadd %s184, %s190
          %s192 = smul.addr %s188, 4
          %s193 = smul.addr %s192, 128
          %s194 = scalar_lea.hbm %s0, %s193
          %s195 = sshll.u32 %s187, 4
          %s196 = int_to_ptr.vmem [resolvable:$true] %s195
          %201 = dma.hbm_to_vmem [thread:$0]  %s194, 2048, %s196, %s184, 512, 512, 32
        $region32: #{tpu_custom_call.1} parent=27 // pred_fallthru
          _
      $region28: #{tpu_custom_call.1} parent=5 // pred_fallthru
        _
      %p202 = scmp.le.s32.totalorder 1, %s17
      %p203 = scmp.lt.s32.totalorder %s17, 3
      %p204 = pnand %p202, %p203
      %p205 = pneg %p204
      // Predicated region
      $region33: #{tpu_custom_call.1} parent=5 // pred_check
        _
      $region34: #{tpu_custom_call.1} parent=5 // pred_check_branch
        %207 = sbr.rel (%p204) target = $region36
      $region35: #{tpu_custom_call.1} parent=5 // pred_region
        %s208 = ssub.s32 %s17, 1
        %s209 = sand.u32 %s30, 1
        %s210 = scalar_lea.sflag [#allocation6], %s209
        %s211 = sand.u32 %s30, 1
        %s212 = smul.addr %s211, 128
        %s213 = scalar_lea.vmem [#allocation5], %s212
        // Predicated region
        $region37: #{tpu_custom_call.1} parent=35 // pred_check
          %p214 = pneg %p43
        $region38: #{tpu_custom_call.1} parent=35 // pred_check_branch
          %216 = sbr.rel (%p214) target = $region40
        $region39: #{tpu_custom_call.1} parent=35 // pred_region
          %217 = dma.done %s210, 2048
        $region40: #{tpu_custom_call.1} parent=35 // pred_fallthru
          _
        // Predicated region
        $region41: #{tpu_custom_call.1} parent=35 // pred_check
          %p218 = pneg %p64
        $region42: #{tpu_custom_call.1} parent=35 // pred_check_branch
          %220 = sbr.rel (%p218) target = $region44
        $region43: #{tpu_custom_call.1} parent=35 // pred_region
          %221 = dma.done [#allocation9], 4096
        $region44: #{tpu_custom_call.1} parent=35 // pred_fallthru
          _
        // Predicated region
        $region45: #{tpu_custom_call.1} parent=35 // pred_check
          %p222 = pneg %p85
        $region46: #{tpu_custom_call.1} parent=35 // pred_check_branch
          %224 = sbr.rel (%p222) target = $region48
        $region47: #{tpu_custom_call.1} parent=35 // pred_region
          %225 = dma.done [#allocation9], 8192
        $region48: #{tpu_custom_call.1} parent=35 // pred_fallthru
          _
        %s226 = sand.u32 %s30, 1
        %s227 = scalar_lea.sflag [#allocation6], %s226
        %s228 = sand.u32 %s30, 1
        %s229 = smul.addr %s228, 128
        %s230 = scalar_lea.vmem [#allocation5], %s229
        %p231 = pneg %p43
        %p232 = pneg %p40
        %p233 = pneg %p64
        %p234 = pneg %p61
        %p235 = pneg %p85
        %p236 = pneg %p82
        %p237 = pneg %p106
        %p238 = pneg %p103
        %p239 = pneg %p132
        %p240 = pneg %p129
        %s241 = sand.u32 %s119, 1
        %s242 = scalar_lea.sflag [#allocation7], %s241
        %s243 = sand.u32 %s119, 1
        %s244 = smul.addr %s243, 32
        %s245 = scalar_lea.vmem [#allocation11], %s244
        %s246 = smul.u32 4, %s22
        %s247 = smul.u32 4, %s22
        %p249 = scmp.eq.s32.totalorder %s22, 0
        // Predicated region
        $region49: #{tpu_custom_call.1} parent=35 // pred_check
          %p250 = pneg %p249
        $region50: #{tpu_custom_call.1} parent=35 // pred_check_branch
          %252 = sbr.rel (%p250) target = $region52
        $region51: #{tpu_custom_call.1} parent=35 // pred_region
          %253 = vst [vmem:[#allocation2] sm:$0xff] 0
          %254 = vst [vmem:[#allocation3] sm:$0xff] 0.0
          %255 = vst [vmem:[#allocation4] sm:$0xff] 0.0
        $region52: #{tpu_custom_call.1} parent=35 // pred_fallthru
          _
        %v256 = vld [vmem:[#allocation8] sm:$0xff]
        %v257 = vld [vmem:[#allocation8 + $0x8] sm:$0xff]
        %v258 = vld [vmem:[#allocation8 + $0x10] sm:$0xff]
        %v259 = vld [vmem:[#allocation8 + $0x18] sm:$0xff]
        %v260 = vld [vmem:[#allocation8 + $0x20] sm:$0xff]
        %v261 = vld [vmem:[#allocation8 + $0x28] sm:$0xff]
        %v262 = vld [vmem:[#allocation8 + $0x30] sm:$0xff]
        %v263 = vld [vmem:[#allocation8 + $0x38] sm:$0xff]
        %v264 = vld [vmem:[#allocation8 + $0x40] sm:$0xff]
        %v265 = vld [vmem:[#allocation8 + $0x48] sm:$0xff]
        %v266 = vld [vmem:[#allocation8 + $0x50] sm:$0xff]
        %v267 = vld [vmem:[#allocation8 + $0x58] sm:$0xff]
        %v268 = vld [vmem:[#allocation8 + $0x60] sm:$0xff]
        %v269 = vld [vmem:[#allocation8 + $0x68] sm:$0xff]
        %v270 = vld [vmem:[#allocation8 + $0x70] sm:$0xff]
        %v271 = vld [vmem:[#allocation8 + $0x78] sm:$0xff]
        %v272 = vld [vmem:[#allocation8 + $0x80] sm:$0xff]
        %v273 = vld [vmem:[#allocation8 + $0x88] sm:$0xff]
        %v274 = vld [vmem:[#allocation8 + $0x90] sm:$0xff]
        %v275 = vld [vmem:[#allocation8 + $0x98] sm:$0xff]
        %v276 = vld [vmem:[#allocation8 + $0xa0] sm:$0xff]
        %v277 = vld [vmem:[#allocation8 + $0xa8] sm:$0xff]
        %v278 = vld [vmem:[#allocation8 + $0xb0] sm:$0xff]
        %v279 = vld [vmem:[#allocation8 + $0xb8] sm:$0xff]
        %v280 = vld [vmem:[#allocation8 + $0xc0] sm:$0xff]
        %v281 = vld [vmem:[#allocation8 + $0xc8] sm:$0xff]
        %v282 = vld [vmem:[#allocation8 + $0xd0] sm:$0xff]
        %v283 = vld [vmem:[#allocation8 + $0xd8] sm:$0xff]
        %v284 = vld [vmem:[#allocation8 + $0xe0] sm:$0xff]
        %v285 = vld [vmem:[#allocation8 + $0xe8] sm:$0xff]
        %v286 = vld [vmem:[#allocation8 + $0xf0] sm:$0xff]
        %v287 = vld [vmem:[#allocation8 + $0xf8] sm:$0xff]
        %v288 = vld [vmem:[#allocation10] sm:$0xff]
        %v289 = vld [vmem:[#allocation10 + $0x8] sm:$0xff]
        %v290 = vld [vmem:[#allocation10 + $0x10] sm:$0xff]
        %v291 = vld [vmem:[#allocation10 + $0x18] sm:$0xff]
        %v292 = vld [vmem:[#allocation10 + $0x20] sm:$0xff]
        %v293 = vld [vmem:[#allocation10 + $0x28] sm:$0xff]
        %v294 = vld [vmem:[#allocation10 + $0x30] sm:$0xff]
        %v295 = vld [vmem:[#allocation10 + $0x38] sm:$0xff]
        %v296 = vld [vmem:[#allocation10 + $0x40] sm:$0xff]
        %v297 = vld [vmem:[#allocation10 + $0x48] sm:$0xff]
        %v298 = vld [vmem:[#allocation10 + $0x50] sm:$0xff]
        %v299 = vld [vmem:[#allocation10 + $0x58] sm:$0xff]
        %v300 = vld [vmem:[#allocation10 + $0x60] sm:$0xff]
        %v301 = vld [vmem:[#allocation10 + $0x68] sm:$0xff]
        %v302 = vld [vmem:[#allocation10 + $0x70] sm:$0xff]
        %v303 = vld [vmem:[#allocation10 + $0x78] sm:$0xff]
        %v304 = vld [vmem:[#allocation10 + $0x80] sm:$0xff]
        %v305 = vld [vmem:[#allocation10 + $0x88] sm:$0xff]
        %v306 = vld [vmem:[#allocation10 + $0x90] sm:$0xff]
        %v307 = vld [vmem:[#allocation10 + $0x98] sm:$0xff]
        %v308 = vld [vmem:[#allocation10 + $0xa0] sm:$0xff]
        %v309 = vld [vmem:[#allocation10 + $0xa8] sm:$0xff]
        %v310 = vld [vmem:[#allocation10 + $0xb0] sm:$0xff]
        %v311 = vld [vmem:[#allocation10 + $0xb8] sm:$0xff]
        %v312 = vld [vmem:[#allocation10 + $0xc0] sm:$0xff]
        %v313 = vld [vmem:[#allocation10 + $0xc8] sm:$0xff]
        %v314 = vld [vmem:[#allocation10 + $0xd0] sm:$0xff]
        %v315 = vld [vmem:[#allocation10 + $0xd8] sm:$0xff]
        %v316 = vld [vmem:[#allocation10 + $0xe0] sm:$0xff]
        %v317 = vld [vmem:[#allocation10 + $0xe8] sm:$0xff]
        %v318 = vld [vmem:[#allocation10 + $0xf0] sm:$0xff]
        %v319 = vld [vmem:[#allocation10 + $0xf8] sm:$0xff]
        %v320 = vld [vmem:[#allocation10 + $0x100] sm:$0xff]
        %v321 = vld [vmem:[#allocation10 + $0x108] sm:$0xff]
        %v322 = vld [vmem:[#allocation10 + $0x110] sm:$0xff]
        %v323 = vld [vmem:[#allocation10 + $0x118] sm:$0xff]
        %v324 = vld [vmem:[#allocation10 + $0x120] sm:$0xff]
        %v325 = vld [vmem:[#allocation10 + $0x128] sm:$0xff]
        %v326 = vld [vmem:[#allocation10 + $0x130] sm:$0xff]
        %v327 = vld [vmem:[#allocation10 + $0x138] sm:$0xff]
        %v328 = vld [vmem:[#allocation10 + $0x140] sm:$0xff]
        %v329 = vld [vmem:[#allocation10 + $0x148] sm:$0xff]
        %v330 = vld [vmem:[#allocation10 + $0x150] sm:$0xff]
        %v331 = vld [vmem:[#allocation10 + $0x158] sm:$0xff]
        %v332 = vld [vmem:[#allocation10 + $0x160] sm:$0xff]
        %v333 = vld [vmem:[#allocation10 + $0x168] sm:$0xff]
        %v334 = vld [vmem:[#allocation10 + $0x170] sm:$0xff]
        %v335 = vld [vmem:[#allocation10 + $0x178] sm:$0xff]
        %v336 = vld [vmem:[#allocation10 + $0x180] sm:$0xff]
        %v337 = vld [vmem:[#allocation10 + $0x188] sm:$0xff]
        %v338 = vld [vmem:[#allocation10 + $0x190] sm:$0xff]
        %v339 = vld [vmem:[#allocation10 + $0x198] sm:$0xff]
        %v340 = vld [vmem:[#allocation10 + $0x1a0] sm:$0xff]
        %v341 = vld [vmem:[#allocation10 + $0x1a8] sm:$0xff]
        %v342 = vld [vmem:[#allocation10 + $0x1b0] sm:$0xff]
        %v343 = vld [vmem:[#allocation10 + $0x1b8] sm:$0xff]
        %v344 = vld [vmem:[#allocation10 + $0x1c0] sm:$0xff]
        %v345 = vld [vmem:[#allocation10 + $0x1c8] sm:$0xff]
        %v346 = vld [vmem:[#allocation10 + $0x1d0] sm:$0xff]
        %v347 = vld [vmem:[#allocation10 + $0x1d8] sm:$0xff]
        %v348 = vld [vmem:[#allocation10 + $0x1e0] sm:$0xff]
        %v349 = vld [vmem:[#allocation10 + $0x1e8] sm:$0xff]
        %v350 = vld [vmem:[#allocation10 + $0x1f0] sm:$0xff]
        %v351 = vld [vmem:[#allocation10 + $0x1f8] sm:$0xff]
        %v352 = vld [vmem:[%s3] sm:$0xf]
        %v354 = vlaneseq
        %v355 = vshrl.u32 %v354, 7
        %v356 = vsub.s32 0, %v355
        %v357 = vrot.slane %v352, %v356
        %v358 = vlaneseq
        %v359 = vshrl.u32 %v358, 7
        %v360 = vsub.s32 1, %v359
        %v361 = vrot.slane %v352, %v360
        %v362 = vlaneseq
        %v363 = vshrl.u32 %v362, 7
        %v364 = vsub.s32 2, %v363
        %v365 = vrot.slane %v352, %v364
        %v366 = vlaneseq
        %v367 = vshrl.u32 %v366, 7
        %v368 = vsub.s32 3, %v367
        %v369 = vrot.slane %v352, %v368
        %v374 = vld [vmem:[%s213] sm:$0xff]
        %v375 = vld [vmem:[%s213 + $0x8] sm:$0xff]
        %v376 = vld [vmem:[%s213 + $0x10] sm:$0xff]
        %v377 = vld [vmem:[%s213 + $0x18] sm:$0xff]
        %v378 = vld [vmem:[#allocation2] sm:$0xf]
        %v411 = vunpack.c.l.b16 %v256
        %v412 = vunpack.c.h.b16 %v256
        %v413 = vunpack.c.l.b16 %v257
        %v414 = vunpack.c.h.b16 %v257
        %v415 = vunpack.c.l.b16 %v258
        %v416 = vunpack.c.h.b16 %v258
        %v417 = vunpack.c.l.b16 %v259
        %v418 = vunpack.c.h.b16 %v259
        %v419 = vunpack.c.l.b16 %v260
        %v420 = vunpack.c.h.b16 %v260
        %v421 = vunpack.c.l.b16 %v261
        %v422 = vunpack.c.h.b16 %v261
        %v423 = vunpack.c.l.b16 %v262
        %v424 = vunpack.c.h.b16 %v262
        %v425 = vunpack.c.l.b16 %v263
        %v426 = vunpack.c.h.b16 %v263
        %v427 = vunpack.c.l.b16 %v264
        %v428 = vunpack.c.h.b16 %v264
        %v429 = vunpack.c.l.b16 %v265
        %v430 = vunpack.c.h.b16 %v265
        %v431 = vunpack.c.l.b16 %v266
        %v432 = vunpack.c.h.b16 %v266
        %v433 = vunpack.c.l.b16 %v267
        %v434 = vunpack.c.h.b16 %v267
        %v435 = vunpack.c.l.b16 %v268
        %v436 = vunpack.c.h.b16 %v268
        %v437 = vunpack.c.l.b16 %v269
        %v438 = vunpack.c.h.b16 %v269
        %v439 = vunpack.c.l.b16 %v270
        %v440 = vunpack.c.h.b16 %v270
        %v441 = vunpack.c.l.b16 %v271
        %v442 = vunpack.c.h.b16 %v271
        %v443 = vunpack.c.l.b16 %v272
        %v444 = vunpack.c.h.b16 %v272
        %v445 = vunpack.c.l.b16 %v273
        %v446 = vunpack.c.h.b16 %v273
        %v447 = vunpack.c.l.b16 %v274
        %v448 = vunpack.c.h.b16 %v274
        %v449 = vunpack.c.l.b16 %v275
        %v450 = vunpack.c.h.b16 %v275
        %v451 = vunpack.c.l.b16 %v276
        %v452 = vunpack.c.h.b16 %v276
        %v453 = vunpack.c.l.b16 %v277
        %v454 = vunpack.c.h.b16 %v277
        %v455 = vunpack.c.l.b16 %v278
        %v456 = vunpack.c.h.b16 %v278
        %v457 = vunpack.c.l.b16 %v279
        %v458 = vunpack.c.h.b16 %v279
        %v459 = vunpack.c.l.b16 %v280
        %v460 = vunpack.c.h.b16 %v280
        %v461 = vunpack.c.l.b16 %v281
        %v462 = vunpack.c.h.b16 %v281
        %v463 = vunpack.c.l.b16 %v282
        %v464 = vunpack.c.h.b16 %v282
        %v465 = vunpack.c.l.b16 %v283
        %v466 = vunpack.c.h.b16 %v283
        %v467 = vunpack.c.l.b16 %v284
        %v468 = vunpack.c.h.b16 %v284
        %v469 = vunpack.c.l.b16 %v285
        %v470 = vunpack.c.h.b16 %v285
        %v471 = vunpack.c.l.b16 %v286
        %v472 = vunpack.c.h.b16 %v286
        %v473 = vunpack.c.l.b16 %v287
        %v474 = vunpack.c.h.b16 %v287
        %v475 = vpack.c.b16 %v415, %v411
        %v476 = vpack.c.b16 %v416, %v412
        %v477 = vpack.c.b16 %v417, %v413
        %v478 = vpack.c.b16 %v418, %v414
        %v479 = vpack.c.b16 %v423, %v419
        %v480 = vpack.c.b16 %v424, %v420
        %v481 = vpack.c.b16 %v425, %v421
        %v482 = vpack.c.b16 %v426, %v422
        %v483 = vpack.c.b16 %v431, %v427
        %v484 = vpack.c.b16 %v432, %v428
        %v485 = vpack.c.b16 %v433, %v429
        %v486 = vpack.c.b16 %v434, %v430
        %v487 = vpack.c.b16 %v439, %v435
        %v488 = vpack.c.b16 %v440, %v436
        %v489 = vpack.c.b16 %v441, %v437
        %v490 = vpack.c.b16 %v442, %v438
        %v491 = vpack.c.b16 %v447, %v443
        %v492 = vpack.c.b16 %v448, %v444
        %v493 = vpack.c.b16 %v449, %v445
        %v494 = vpack.c.b16 %v450, %v446
        %v495 = vpack.c.b16 %v455, %v451
        %v496 = vpack.c.b16 %v456, %v452
        %v497 = vpack.c.b16 %v457, %v453
        %v498 = vpack.c.b16 %v458, %v454
        %v499 = vpack.c.b16 %v463, %v459
        %v500 = vpack.c.b16 %v464, %v460
        %v501 = vpack.c.b16 %v465, %v461
        %v502 = vpack.c.b16 %v466, %v462
        %v503 = vpack.c.b16 %v471, %v467
        %v504 = vpack.c.b16 %v472, %v468
        %v505 = vpack.c.b16 %v473, %v469
        %v506 = vpack.c.b16 %v474, %v470
        %539 = vmatprep.subr.bf16.mxu0 %v476
        %540 = vmatpush1.bf16.msra.mxu0 %v475
        %541 = vmatprep.subr.bf16.mxu0 %v480
        %542 = vmatpush1.bf16.msra.mxu0 %v479
        %543 = vmatprep.subr.bf16.mxu0 %v484
        %544 = vmatpush1.bf16.msra.mxu0 %v483
        %545 = vmatprep.subr.bf16.mxu0 %v488
        %546 = vmatpush1.bf16.msra.mxu0 %v487
        %547 = vmatprep.subr.bf16.mxu0 %v492
        %548 = vmatpush1.bf16.msra.mxu0 %v491
        %549 = vmatprep.subr.bf16.mxu0 %v496
        %550 = vmatpush1.bf16.msra.mxu0 %v495
        %551 = vmatprep.subr.bf16.mxu0 %v500
        %552 = vmatpush1.bf16.msra.mxu0 %v499
        %553 = vmatprep.subr.bf16.mxu0 %v504
        %554 = vmatpush1.bf16.msra.mxu0 %v503
        %555 = vmatprep.subr.bf16.mxu0 0
        %556 = vmatpush1.bf16.msra.mxu0 0
        %557 = vmatprep.subr.bf16.mxu0 0
        %558 = vmatpush1.bf16.msra.mxu0 0
        %559 = vmatprep.subr.bf16.mxu0 0
        %560 = vmatpush1.bf16.msra.mxu0 0
        %561 = vmatprep.subr.bf16.mxu0 0
        %562 = vmatpush1.bf16.msra.mxu0 0
        %563 = vmatprep.subr.bf16.mxu0 0
        %564 = vmatpush1.bf16.msra.mxu0 0
        %565 = vmatprep.subr.bf16.mxu0 0
        %566 = vmatpush1.bf16.msra.mxu0 0
        %567 = vmatprep.subr.bf16.mxu0 0
        %568 = vmatpush1.bf16.msra.mxu0 0
        %569 = vmatprep.subr.bf16.mxu0 0
        %570 = vmatpush1.bf16.msra.mxu0 0
        %571 = vmatprep.mubr.bf16.mxu0 0
        %572 = vmatmul.mubr.bf16.gmra.mrb[0].mxu0 %v378
        %v573 = vpop.f32.mrb[0].mxu0
        %v574 = vadd.f32 0.0, %v573
        %v575 = vpop.f32.mrb[0].mxu0
        %v576 = vadd.f32 0.0, %v575
        %v577 = vpop.f32.mrb[0].mxu0
        %v578 = vpop.f32.mrb[0].mxu0
        %579 = vdwg.mxu0
        %580 = vmatprep.subr.bf16.mxu0 %v478
        %581 = vmatpush1.bf16.msra.mxu0 %v477
        %582 = vmatprep.subr.bf16.mxu0 %v482
        %583 = vmatpush1.bf16.msra.mxu0 %v481
        %584 = vmatprep.subr.bf16.mxu0 %v486
        %585 = vmatpush1.bf16.msra.mxu0 %v485
        %586 = vmatprep.subr.bf16.mxu0 %v490
        %587 = vmatpush1.bf16.msra.mxu0 %v489
        %588 = vmatprep.subr.bf16.mxu0 %v494
        %589 = vmatpush1.bf16.msra.mxu0 %v493
        %590 = vmatprep.subr.bf16.mxu0 %v498
        %591 = vmatpush1.bf16.msra.mxu0 %v497
        %592 = vmatprep.subr.bf16.mxu0 %v502
        %593 = vmatpush1.bf16.msra.mxu0 %v501
        %594 = vmatprep.subr.bf16.mxu0 %v506
        %595 = vmatpush1.bf16.msra.mxu0 %v505
        %596 = vmatprep.subr.bf16.mxu0 0
        %597 = vmatpush1.bf16.msra.mxu0 0
        %598 = vmatprep.subr.bf16.mxu0 0
        %599 = vmatpush1.bf16.msra.mxu0 0
        %600 = vmatprep.subr.bf16.mxu0 0
        %601 = vmatpush1.bf16.msra.mxu0 0
        %602 = vmatprep.subr.bf16.mxu0 0
        %603 = vmatpush1.bf16.msra.mxu0 0
        %604 = vmatprep.subr.bf16.mxu0 0
        %605 = vmatpush1.bf16.msra.mxu0 0
        %606 = vmatprep.subr.bf16.mxu0 0
        %607 = vmatpush1.bf16.msra.mxu0 0
        %608 = vmatprep.subr.bf16.mxu0 0
        %609 = vmatpush1.bf16.msra.mxu0 0
        %610 = vmatprep.subr.bf16.mxu0 0
        %611 = vmatpush1.bf16.msra.mxu0 0
        %612 = vmatprep.mubr.bf16.mxu0 0
        %613 = vmatmul.mubr.bf16.gmra.mrb[0].mxu0 %v378
        %v614 = vpop.f32.mrb[0].mxu0
        %v615 = vadd.f32 0.0, %v614
        %v616 = vpop.f32.mrb[0].mxu0
        %v617 = vadd.f32 0.0, %v616
        %v618 = vpop.f32.mrb[0].mxu0
        %v619 = vpop.f32.mrb[0].mxu0
        %620 = vdwg.mxu0
        %v621 = vadd.f32 %v374, %v574
        %v622 = vadd.f32 %v375, %v576
        %v623 = vadd.f32 %v376, %v615
        %v624 = vadd.f32 %v377, %v617
        %v625 = vld [vmem:[#allocation3] sm:$0xff]
        %v626 = vxor.u32 %v621, 2147483648
        %v627 = vmul.f32 %v626, 1.442695
        %v628 = vpow.pop %v627
        %v629 = vadd.f32 %v628, 1.0
        %v630 = vrcp.pop %v629
        %v631 = vmul.f32 1.0, %v630
        %v632 = vxor.u32 %v622, 2147483648
        %v633 = vmul.f32 %v632, 1.442695
        %v634 = vpow.pop %v633
        %v635 = vadd.f32 %v634, 1.0
        %v636 = vrcp.pop %v635
        %v637 = vmul.f32 1.0, %v636
        %v638 = vtanh.pop %v623
        %v639 = vxor.u32 %v624, 2147483648
        %v640 = vmul.f32 %v639, 1.442695
        %v641 = vpow.pop %v640
        %v642 = vadd.f32 %v641, 1.0
        %v643 = vrcp.pop %v642
        %v644 = vmul.f32 1.0, %v643
        %v645 = vmul.f32 %v637, %v625
        %v646 = vmul.f32 %v631, %v638
        %v647 = vadd.f32 %v645, %v646
        %v648 = vtanh.pop %v647
        %v649 = vmul.f32 %v644, %v648
        %650 = vst [vmem:[#allocation3] sm:$0xff] %v647
        %v651 = vpack.c.bf16 %v649, %v649
        %652 = vst [vmem:[#allocation2] sm:$0xf] %v651
        %v653 = vld [vmem:[#allocation2] sm:$0xff]
        %v655 = vunpack.c.l.b16 %v653
        %v656 = vunpack.c.h.b16 %v653
        %v657 = vpack.c.b16 %v655, %v655
        %v658 = vpack.c.b16 %v656, %v656
        %v725 = vunpack.c.l.b16 %v288
        %v726 = vunpack.c.h.b16 %v288
        %v727 = vunpack.c.l.b16 %v289
        %v728 = vunpack.c.h.b16 %v289
        %v729 = vunpack.c.l.b16 %v290
        %v730 = vunpack.c.h.b16 %v290
        %v731 = vunpack.c.l.b16 %v291
        %v732 = vunpack.c.h.b16 %v291
        %v733 = vunpack.c.l.b16 %v292
        %v734 = vunpack.c.h.b16 %v292
        %v735 = vunpack.c.l.b16 %v293
        %v736 = vunpack.c.h.b16 %v293
        %v737 = vunpack.c.l.b16 %v294
        %v738 = vunpack.c.h.b16 %v294
        %v739 = vunpack.c.l.b16 %v295
        %v740 = vunpack.c.h.b16 %v295
        %v741 = vunpack.c.l.b16 %v296
        %v742 = vunpack.c.h.b16 %v296
        %v743 = vunpack.c.l.b16 %v297
        %v744 = vunpack.c.h.b16 %v297
        %v745 = vunpack.c.l.b16 %v298
        %v746 = vunpack.c.h.b16 %v298
        %v747 = vunpack.c.l.b16 %v299
        %v748 = vunpack.c.h.b16 %v299
        %v749 = vunpack.c.l.b16 %v300
        %v750 = vunpack.c.h.b16 %v300
        %v751 = vunpack.c.l.b16 %v301
        %v752 = vunpack.c.h.b16 %v301
        %v753 = vunpack.c.l.b16 %v302
        %v754 = vunpack.c.h.b16 %v302
        %v755 = vunpack.c.l.b16 %v303
        %v756 = vunpack.c.h.b16 %v303
        %v757 = vunpack.c.l.b16 %v304
        %v758 = vunpack.c.h.b16 %v304
        %v759 = vunpack.c.l.b16 %v305
        %v760 = vunpack.c.h.b16 %v305
        %v761 = vunpack.c.l.b16 %v306
        %v762 = vunpack.c.h.b16 %v306
        %v763 = vunpack.c.l.b16 %v307
        %v764 = vunpack.c.h.b16 %v307
        %v765 = vunpack.c.l.b16 %v308
        %v766 = vunpack.c.h.b16 %v308
        %v767 = vunpack.c.l.b16 %v309
        %v768 = vunpack.c.h.b16 %v309
        %v769 = vunpack.c.l.b16 %v310
        %v770 = vunpack.c.h.b16 %v310
        %v771 = vunpack.c.l.b16 %v311
        %v772 = vunpack.c.h.b16 %v311
        %v773 = vunpack.c.l.b16 %v312
        %v774 = vunpack.c.h.b16 %v312
        %v775 = vunpack.c.l.b16 %v313
        %v776 = vunpack.c.h.b16 %v313
        %v777 = vunpack.c.l.b16 %v314
        %v778 = vunpack.c.h.b16 %v314
        %v779 = vunpack.c.l.b16 %v315
        %v780 = vunpack.c.h.b16 %v315
        %v781 = vunpack.c.l.b16 %v316
        %v782 = vunpack.c.h.b16 %v316
        %v783 = vunpack.c.l.b16 %v317
        %v784 = vunpack.c.h.b16 %v317
        %v785 = vunpack.c.l.b16 %v318
        %v786 = vunpack.c.h.b16 %v318
        %v787 = vunpack.c.l.b16 %v319
        %v788 = vunpack.c.h.b16 %v319
        %v789 = vunpack.c.l.b16 %v320
        %v790 = vunpack.c.h.b16 %v320
        %v791 = vunpack.c.l.b16 %v321
        %v792 = vunpack.c.h.b16 %v321
        %v793 = vunpack.c.l.b16 %v322
        %v794 = vunpack.c.h.b16 %v322
        %v795 = vunpack.c.l.b16 %v323
        %v796 = vunpack.c.h.b16 %v323
        %v797 = vunpack.c.l.b16 %v324
        %v798 = vunpack.c.h.b16 %v324
        %v799 = vunpack.c.l.b16 %v325
        %v800 = vunpack.c.h.b16 %v325
        %v801 = vunpack.c.l.b16 %v326
        %v802 = vunpack.c.h.b16 %v326
        %v803 = vunpack.c.l.b16 %v327
        %v804 = vunpack.c.h.b16 %v327
        %v805 = vunpack.c.l.b16 %v328
        %v806 = vunpack.c.h.b16 %v328
        %v807 = vunpack.c.l.b16 %v329
        %v808 = vunpack.c.h.b16 %v329
        %v809 = vunpack.c.l.b16 %v330
        %v810 = vunpack.c.h.b16 %v330
        %v811 = vunpack.c.l.b16 %v331
        %v812 = vunpack.c.h.b16 %v331
        %v813 = vunpack.c.l.b16 %v332
        %v814 = vunpack.c.h.b16 %v332
        %v815 = vunpack.c.l.b16 %v333
        %v816 = vunpack.c.h.b16 %v333
        %v817 = vunpack.c.l.b16 %v334
        %v818 = vunpack.c.h.b16 %v334
        %v819 = vunpack.c.l.b16 %v335
        %v820 = vunpack.c.h.b16 %v335
        %v821 = vunpack.c.l.b16 %v336
        %v822 = vunpack.c.h.b16 %v336
        %v823 = vunpack.c.l.b16 %v337
        %v824 = vunpack.c.h.b16 %v337
        %v825 = vunpack.c.l.b16 %v338
        %v826 = vunpack.c.h.b16 %v338
        %v827 = vunpack.c.l.b16 %v339
        %v828 = vunpack.c.h.b16 %v339
        %v829 = vunpack.c.l.b16 %v340
        %v830 = vunpack.c.h.b16 %v340
        %v831 = vunpack.c.l.b16 %v341
        %v832 = vunpack.c.h.b16 %v341
        %v833 = vunpack.c.l.b16 %v342
        %v834 = vunpack.c.h.b16 %v342
        %v835 = vunpack.c.l.b16 %v343
        %v836 = vunpack.c.h.b16 %v343
        %v837 = vunpack.c.l.b16 %v344
        %v838 = vunpack.c.h.b16 %v344
        %v839 = vunpack.c.l.b16 %v345
        %v840 = vunpack.c.h.b16 %v345
        %v841 = vunpack.c.l.b16 %v346
        %v842 = vunpack.c.h.b16 %v346
        %v843 = vunpack.c.l.b16 %v347
        %v844 = vunpack.c.h.b16 %v347
        %v845 = vunpack.c.l.b16 %v348
        %v846 = vunpack.c.h.b16 %v348
        %v847 = vunpack.c.l.b16 %v349
        %v848 = vunpack.c.h.b16 %v349
        %v849 = vunpack.c.l.b16 %v350
        %v850 = vunpack.c.h.b16 %v350
        %v851 = vunpack.c.l.b16 %v351
        %v852 = vunpack.c.h.b16 %v351
        %v853 = vpack.c.b16 %v729, %v725
        %v854 = vpack.c.b16 %v730, %v726
        %v855 = vpack.c.b16 %v731, %v727
        %v856 = vpack.c.b16 %v732, %v728
        %v857 = vpack.c.b16 %v737, %v733
        %v858 = vpack.c.b16 %v738, %v734
        %v859 = vpack.c.b16 %v739, %v735
        %v860 = vpack.c.b16 %v740, %v736
        %v861 = vpack.c.b16 %v745, %v741
        %v862 = vpack.c.b16 %v746, %v742
        %v863 = vpack.c.b16 %v747, %v743
        %v864 = vpack.c.b16 %v748, %v744
        %v865 = vpack.c.b16 %v753, %v749
        %v866 = vpack.c.b16 %v754, %v750
        %v867 = vpack.c.b16 %v755, %v751
        %v868 = vpack.c.b16 %v756, %v752
        %v869 = vpack.c.b16 %v761, %v757
        %v870 = vpack.c.b16 %v762, %v758
        %v871 = vpack.c.b16 %v763, %v759
        %v872 = vpack.c.b16 %v764, %v760
        %v873 = vpack.c.b16 %v769, %v765
        %v874 = vpack.c.b16 %v770, %v766
        %v875 = vpack.c.b16 %v771, %v767
        %v876 = vpack.c.b16 %v772, %v768
        %v877 = vpack.c.b16 %v777, %v773
        %v878 = vpack.c.b16 %v778, %v774
        %v879 = vpack.c.b16 %v779, %v775
        %v880 = vpack.c.b16 %v780, %v776
        %v881 = vpack.c.b16 %v785, %v781
        %v882 = vpack.c.b16 %v786, %v782
        %v883 = vpack.c.b16 %v787, %v783
        %v884 = vpack.c.b16 %v788, %v784
        %v885 = vpack.c.b16 %v793, %v789
        %v886 = vpack.c.b16 %v794, %v790
        %v887 = vpack.c.b16 %v795, %v791
        %v888 = vpack.c.b16 %v796, %v792
        %v889 = vpack.c.b16 %v801, %v797
        %v890 = vpack.c.b16 %v802, %v798
        %v891 = vpack.c.b16 %v803, %v799
        %v892 = vpack.c.b16 %v804, %v800
        %v893 = vpack.c.b16 %v809, %v805
        %v894 = vpack.c.b16 %v810, %v806
        %v895 = vpack.c.b16 %v811, %v807
        %v896 = vpack.c.b16 %v812, %v808
        %v897 = vpack.c.b16 %v817, %v813
        %v898 = vpack.c.b16 %v818, %v814
        %v899 = vpack.c.b16 %v819, %v815
        %v900 = vpack.c.b16 %v820, %v816
        %v901 = vpack.c.b16 %v825, %v821
        %v902 = vpack.c.b16 %v826, %v822
        %v903 = vpack.c.b16 %v827, %v823
        %v904 = vpack.c.b16 %v828, %v824
        %v905 = vpack.c.b16 %v833, %v829
        %v906 = vpack.c.b16 %v834, %v830
        %v907 = vpack.c.b16 %v835, %v831
        %v908 = vpack.c.b16 %v836, %v832
        %v909 = vpack.c.b16 %v841, %v837
        %v910 = vpack.c.b16 %v842, %v838
        %v911 = vpack.c.b16 %v843, %v839
        %v912 = vpack.c.b16 %v844, %v840
        %v913 = vpack.c.b16 %v849, %v845
        %v914 = vpack.c.b16 %v850, %v846
        %v915 = vpack.c.b16 %v851, %v847
        %v916 = vpack.c.b16 %v852, %v848
        %981 = vmatprep.subr.bf16.mxu0 %v854
        %982 = vmatpush1.bf16.msra.mxu0 %v853
        %983 = vmatprep.subr.bf16.mxu0 %v858
        %984 = vmatpush1.bf16.msra.mxu0 %v857
        %985 = vmatprep.subr.bf16.mxu0 %v862
        %986 = vmatpush1.bf16.msra.mxu0 %v861
        %987 = vmatprep.subr.bf16.mxu0 %v866
        %988 = vmatpush1.bf16.msra.mxu0 %v865
        %989 = vmatprep.subr.bf16.mxu0 %v870
        %990 = vmatpush1.bf16.msra.mxu0 %v869
        %991 = vmatprep.subr.bf16.mxu0 %v874
        %992 = vmatpush1.bf16.msra.mxu0 %v873
        %993 = vmatprep.subr.bf16.mxu0 %v878
        %994 = vmatpush1.bf16.msra.mxu0 %v877
        %995 = vmatprep.subr.bf16.mxu0 %v882
        %996 = vmatpush1.bf16.msra.mxu0 %v881
        %997 = vmatprep.subr.bf16.mxu0 %v886
        %998 = vmatpush1.bf16.msra.mxu0 %v885
        %999 = vmatprep.subr.bf16.mxu0 %v890
        %1000 = vmatpush1.bf16.msra.mxu0 %v889
        %1001 = vmatprep.subr.bf16.mxu0 %v894
        %1002 = vmatpush1.bf16.msra.mxu0 %v893
        %1003 = vmatprep.subr.bf16.mxu0 %v898
        %1004 = vmatpush1.bf16.msra.mxu0 %v897
        %1005 = vmatprep.subr.bf16.mxu0 %v902
        %1006 = vmatpush1.bf16.msra.mxu0 %v901
        %1007 = vmatprep.subr.bf16.mxu0 %v906
        %1008 = vmatpush1.bf16.msra.mxu0 %v905
        %1009 = vmatprep.subr.bf16.mxu0 %v910
        %1010 = vmatpush1.bf16.msra.mxu0 %v909
        %1011 = vmatprep.subr.bf16.mxu0 %v914
        %1012 = vmatpush1.bf16.msra.mxu0 %v913
        %1013 = vmatprep.mubr.bf16.mxu0 %v658
        %1014 = vmatmul.mubr.bf16.gmra.mrb[0].mxu0 %v657
        %v1015 = vpop.f32.mrb[0].mxu0
        %v1016 = vadd.f32 %v357, %v1015
        %v1017 = vpop.f32.mrb[0].mxu0
        %v1018 = vadd.f32 %v361, %v1017
        %v1019 = vpop.f32.mrb[0].mxu0
        %v1020 = vpop.f32.mrb[0].mxu0
        %1021 = vdwg.mxu0
        %1022 = vmatprep.subr.bf16.mxu0 %v856
        %1023 = vmatpush1.bf16.msra.mxu0 %v855
        %1024 = vmatprep.subr.bf16.mxu0 %v860
        %1025 = vmatpush1.bf16.msra.mxu0 %v859
        %1026 = vmatprep.subr.bf16.mxu0 %v864
        %1027 = vmatpush1.bf16.msra.mxu0 %v863
        %1028 = vmatprep.subr.bf16.mxu0 %v868
        %1029 = vmatpush1.bf16.msra.mxu0 %v867
        %1030 = vmatprep.subr.bf16.mxu0 %v872
        %1031 = vmatpush1.bf16.msra.mxu0 %v871
        %1032 = vmatprep.subr.bf16.mxu0 %v876
        %1033 = vmatpush1.bf16.msra.mxu0 %v875
        %1034 = vmatprep.subr.bf16.mxu0 %v880
        %1035 = vmatpush1.bf16.msra.mxu0 %v879
        %1036 = vmatprep.subr.bf16.mxu0 %v884
        %1037 = vmatpush1.bf16.msra.mxu0 %v883
        %1038 = vmatprep.subr.bf16.mxu0 %v888
        %1039 = vmatpush1.bf16.msra.mxu0 %v887
        %1040 = vmatprep.subr.bf16.mxu0 %v892
        %1041 = vmatpush1.bf16.msra.mxu0 %v891
        %1042 = vmatprep.subr.bf16.mxu0 %v896
        %1043 = vmatpush1.bf16.msra.mxu0 %v895
        %1044 = vmatprep.subr.bf16.mxu0 %v900
        %1045 = vmatpush1.bf16.msra.mxu0 %v899
        %1046 = vmatprep.subr.bf16.mxu0 %v904
        %1047 = vmatpush1.bf16.msra.mxu0 %v903
        %1048 = vmatprep.subr.bf16.mxu0 %v908
        %1049 = vmatpush1.bf16.msra.mxu0 %v907
        %1050 = vmatprep.subr.bf16.mxu0 %v912
        %1051 = vmatpush1.bf16.msra.mxu0 %v911
        %1052 = vmatprep.subr.bf16.mxu0 %v916
        %1053 = vmatpush1.bf16.msra.mxu0 %v915
        %1054 = vmatprep.mubr.bf16.mxu0 %v658
        %1055 = vmatmul.mubr.bf16.gmra.mrb[0].mxu0 %v657
        %v1056 = vpop.f32.mrb[0].mxu0
        %v1057 = vadd.f32 %v365, %v1056
        %v1058 = vpop.f32.mrb[0].mxu0
        %v1059 = vadd.f32 %v369, %v1058
        %v1060 = vpop.f32.mrb[0].mxu0
        %v1061 = vpop.f32.mrb[0].mxu0
        %1062 = vdwg.mxu0
        %v1063 = vld [vmem:[#allocation4] sm:$0xff]
        %v1064 = vxor.u32 %v1016, 2147483648
        %v1065 = vmul.f32 %v1064, 1.442695
        %v1066 = vpow.pop %v1065
        %v1067 = vadd.f32 %v1066, 1.0
        %v1068 = vrcp.pop %v1067
        %v1069 = vmul.f32 1.0, %v1068
        %v1070 = vxor.u32 %v1018, 2147483648
        %v1071 = vmul.f32 %v1070, 1.442695
        %v1072 = vpow.pop %v1071
        %v1073 = vadd.f32 %v1072, 1.0
        %v1074 = vrcp.pop %v1073
        %v1075 = vmul.f32 1.0, %v1074
        %v1076 = vtanh.pop %v1057
        %v1077 = vxor.u32 %v1059, 2147483648
        %v1078 = vmul.f32 %v1077, 1.442695
        %v1079 = vpow.pop %v1078
        %v1080 = vadd.f32 %v1079, 1.0
        %v1081 = vrcp.pop %v1080
        %v1082 = vmul.f32 1.0, %v1081
        %v1083 = vmul.f32 %v1075, %v1063
        %v1084 = vmul.f32 %v1069, %v1076
        %v1085 = vadd.f32 %v1083, %v1084
        %v1086 = vtanh.pop %v1085
        %v1087 = vmul.f32 %v1082, %v1086
        %1088 = vst [vmem:[#allocation4] sm:$0xff] %v1085
        %v1089 = vpack.c.bf16 %v1087, %v1087
        %1090 = vst [vmem:[#allocation2 + $0x4] sm:$0xf] %v1089
        %1091 = vst [vmem:[%s245] sm:$0xff] %v1087
        %s1092 = scalar_lea.vmem %s213, 32 [#allocation5]
        %v1093 = vld [vmem:[%s1092] sm:$0xff]
        %v1094 = vld [vmem:[%s1092 + $0x8] sm:$0xff]
        %v1095 = vld [vmem:[%s1092 + $0x10] sm:$0xff]
        %v1096 = vld [vmem:[%s1092 + $0x18] sm:$0xff]
        %v1097 = vld [vmem:[#allocation2] sm:$0xf]
        %1098 = vmatprep.subr.bf16.mxu0 %v476
        %1099 = vmatpush1.bf16.msra.mxu0 %v475
        %1100 = vmatprep.subr.bf16.mxu0 %v480
        %1101 = vmatpush1.bf16.msra.mxu0 %v479
        %1102 = vmatprep.subr.bf16.mxu0 %v484
        %1103 = vmatpush1.bf16.msra.mxu0 %v483
        %1104 = vmatprep.subr.bf16.mxu0 %v488
        %1105 = vmatpush1.bf16.msra.mxu0 %v487
        %1106 = vmatprep.subr.bf16.mxu0 %v492
        %1107 = vmatpush1.bf16.msra.mxu0 %v491
        %1108 = vmatprep.subr.bf16.mxu0 %v496
        %1109 = vmatpush1.bf16.msra.mxu0 %v495
        %1110 = vmatprep.subr.bf16.mxu0 %v500
        %1111 = vmatpush1.bf16.msra.mxu0 %v499
        %1112 = vmatprep.subr.bf16.mxu0 %v504
        %1113 = vmatpush1.bf16.msra.mxu0 %v503
        %1114 = vmatprep.subr.bf16.mxu0 0
        %1115 = vmatpush1.bf16.msra.mxu0 0
        %1116 = vmatprep.subr.bf16.mxu0 0
        %1117 = vmatpush1.bf16.msra.mxu0 0
        %1118 = vmatprep.subr.bf16.mxu0 0
        %1119 = vmatpush1.bf16.msra.mxu0 0
        %1120 = vmatprep.subr.bf16.mxu0 0
        %1121 = vmatpush1.bf16.msra.mxu0 0
        %1122 = vmatprep.subr.bf16.mxu0 0
        %1123 = vmatpush1.bf16.msra.mxu0 0
        %1124 = vmatprep.subr.bf16.mxu0 0
        %1125 = vmatpush1.bf16.msra.mxu0 0
        %1126 = vmatprep.subr.bf16.mxu0 0
        %1127 = vmatpush1.bf16.msra.mxu0 0
        %1128 = vmatprep.subr.bf16.mxu0 0
        %1129 = vmatpush1.bf16.msra.mxu0 0
        %1130 = vmatprep.mubr.bf16.mxu0 0
        %1131 = vmatmul.mubr.bf16.gmra.mrb[0].mxu0 %v1097
        %v1132 = vpop.f32.mrb[0].mxu0
        %v1133 = vadd.f32 0.0, %v1132
        %v1134 = vpop.f32.mrb[0].mxu0
        %v1135 = vadd.f32 0.0, %v1134
        %v1136 = vpop.f32.mrb[0].mxu0
        %v1137 = vpop.f32.mrb[0].mxu0
        %1138 = vdwg.mxu0
        %1139 = vmatprep.subr.bf16.mxu0 %v478
        %1140 = vmatpush1.bf16.msra.mxu0 %v477
        %1141 = vmatprep.subr.bf16.mxu0 %v482
        %1142 = vmatpush1.bf16.msra.mxu0 %v481
        %1143 = vmatprep.subr.bf16.mxu0 %v486
        %1144 = vmatpush1.bf16.msra.mxu0 %v485
        %1145 = vmatprep.subr.bf16.mxu0 %v490
        %1146 = vmatpush1.bf16.msra.mxu0 %v489
        %1147 = vmatprep.subr.bf16.mxu0 %v494
        %1148 = vmatpush1.bf16.msra.mxu0 %v493
        %1149 = vmatprep.subr.bf16.mxu0 %v498
        %1150 = vmatpush1.bf16.msra.mxu0 %v497
        %1151 = vmatprep.subr.bf16.mxu0 %v502
        %1152 = vmatpush1.bf16.msra.mxu0 %v501
        %1153 = vmatprep.subr.bf16.mxu0 %v506
        %1154 = vmatpush1.bf16.msra.mxu0 %v505
        %1155 = vmatprep.subr.bf16.mxu0 0
        %1156 = vmatpush1.bf16.msra.mxu0 0
        %1157 = vmatprep.subr.bf16.mxu0 0
        %1158 = vmatpush1.bf16.msra.mxu0 0
        %1159 = vmatprep.subr.bf16.mxu0 0
        %1160 = vmatpush1.bf16.msra.mxu0 0
        %1161 = vmatprep.subr.bf16.mxu0 0
        %1162 = vmatpush1.bf16.msra.mxu0 0
        %1163 = vmatprep.subr.bf16.mxu0 0
        %1164 = vmatpush1.bf16.msra.mxu0 0
        %1165 = vmatprep.subr.bf16.mxu0 0
        %1166 = vmatpush1.bf16.msra.mxu0 0
        %1167 = vmatprep.subr.bf16.mxu0 0
        %1168 = vmatpush1.bf16.msra.mxu0 0
        %1169 = vmatprep.subr.bf16.mxu0 0
        %1170 = vmatpush1.bf16.msra.mxu0 0
        %1171 = vmatprep.mubr.bf16.mxu0 0
        %1172 = vmatmul.mubr.bf16.gmra.mrb[0].mxu0 %v1097
        %v1173 = vpop.f32.mrb[0].mxu0
        %v1174 = vadd.f32 0.0, %v1173
        %v1175 = vpop.f32.mrb[0].mxu0
        %v1176 = vadd.f32 0.0, %v1175
        %v1177 = vpop.f32.mrb[0].mxu0
        %v1178 = vpop.f32.mrb[0].mxu0
        %1179 = vdwg.mxu0
        %v1180 = vadd.f32 %v1093, %v1133
        %v1181 = vadd.f32 %v1094, %v1135
        %v1182 = vadd.f32 %v1095, %v1174
        %v1183 = vadd.f32 %v1096, %v1176
        %v1184 = vld [vmem:[#allocation3] sm:$0xff]
        %v1185 = vxor.u32 %v1180, 2147483648
        %v1186 = vmul.f32 %v1185, 1.442695
        %v1187 = vpow.pop %v1186
        %v1188 = vadd.f32 %v1187, 1.0
        %v1189 = vrcp.pop %v1188
        %v1190 = vmul.f32 1.0, %v1189
        %v1191 = vxor.u32 %v1181, 2147483648
        %v1192 = vmul.f32 %v1191, 1.442695
        %v1193 = vpow.pop %v1192
        %v1194 = vadd.f32 %v1193, 1.0
        %v1195 = vrcp.pop %v1194
        %v1196 = vmul.f32 1.0, %v1195
        %v1197 = vtanh.pop %v1182
        %v1198 = vxor.u32 %v1183, 2147483648
        %v1199 = vmul.f32 %v1198, 1.442695
        %v1200 = vpow.pop %v1199
        %v1201 = vadd.f32 %v1200, 1.0
        %v1202 = vrcp.pop %v1201
        %v1203 = vmul.f32 1.0, %v1202
        %v1204 = vmul.f32 %v1196, %v1184
        %v1205 = vmul.f32 %v1190, %v1197
        %v1206 = vadd.f32 %v1204, %v1205
        %v1207 = vtanh.pop %v1206
        %v1208 = vmul.f32 %v1203, %v1207
        %1209 = vst [vmem:[#allocation3] sm:$0xff] %v1206
        %v1210 = vpack.c.bf16 %v1208, %v1208
        %1211 = vst [vmem:[#allocation2] sm:$0xf] %v1210
        %v1212 = vld [vmem:[#allocation2] sm:$0xff]
        %v1214 = vunpack.c.l.b16 %v1212
        %v1215 = vunpack.c.h.b16 %v1212
        %v1216 = vpack.c.b16 %v1214, %v1214
        %v1217 = vpack.c.b16 %v1215, %v1215
        %1220 = vmatprep.subr.bf16.mxu0 %v854
        %1221 = vmatpush1.bf16.msra.mxu0 %v853
        %1222 = vmatprep.subr.bf16.mxu0 %v858
        %1223 = vmatpush1.bf16.msra.mxu0 %v857
        %1224 = vmatprep.subr.bf16.mxu0 %v862
        %1225 = vmatpush1.bf16.msra.mxu0 %v861
        %1226 = vmatprep.subr.bf16.mxu0 %v866
        %1227 = vmatpush1.bf16.msra.mxu0 %v865
        %1228 = vmatprep.subr.bf16.mxu0 %v870
        %1229 = vmatpush1.bf16.msra.mxu0 %v869
        %1230 = vmatprep.subr.bf16.mxu0 %v874
        %1231 = vmatpush1.bf16.msra.mxu0 %v873
        %1232 = vmatprep.subr.bf16.mxu0 %v878
        %1233 = vmatpush1.bf16.msra.mxu0 %v877
        %1234 = vmatprep.subr.bf16.mxu0 %v882
        %1235 = vmatpush1.bf16.msra.mxu0 %v881
        %1236 = vmatprep.subr.bf16.mxu0 %v886
        %1237 = vmatpush1.bf16.msra.mxu0 %v885
        %1238 = vmatprep.subr.bf16.mxu0 %v890
        %1239 = vmatpush1.bf16.msra.mxu0 %v889
        %1240 = vmatprep.subr.bf16.mxu0 %v894
        %1241 = vmatpush1.bf16.msra.mxu0 %v893
        %1242 = vmatprep.subr.bf16.mxu0 %v898
        %1243 = vmatpush1.bf16.msra.mxu0 %v897
        %1244 = vmatprep.subr.bf16.mxu0 %v902
        %1245 = vmatpush1.bf16.msra.mxu0 %v901
        %1246 = vmatprep.subr.bf16.mxu0 %v906
        %1247 = vmatpush1.bf16.msra.mxu0 %v905
        %1248 = vmatprep.subr.bf16.mxu0 %v910
        %1249 = vmatpush1.bf16.msra.mxu0 %v909
        %1250 = vmatprep.subr.bf16.mxu0 %v914
        %1251 = vmatpush1.bf16.msra.mxu0 %v913
        %1252 = vmatprep.mubr.bf16.mxu0 %v1217
        %1253 = vmatmul.mubr.bf16.gmra.mrb[0].mxu0 %v1216
        %v1254 = vpop.f32.mrb[0].mxu0
        %v1255 = vadd.f32 %v357, %v1254
        %v1256 = vpop.f32.mrb[0].mxu0
        %v1257 = vadd.f32 %v361, %v1256
        %v1258 = vpop.f32.mrb[0].mxu0
        %v1259 = vpop.f32.mrb[0].mxu0
        %1260 = vdwg.mxu0
        %1261 = vmatprep.subr.bf16.mxu0 %v856
        %1262 = vmatpush1.bf16.msra.mxu0 %v855
        %1263 = vmatprep.subr.bf16.mxu0 %v860
        %1264 = vmatpush1.bf16.msra.mxu0 %v859
        %1265 = vmatprep.subr.bf16.mxu0 %v864
        %1266 = vmatpush1.bf16.msra.mxu0 %v863
        %1267 = vmatprep.subr.bf16.mxu0 %v868
        %1268 = vmatpush1.bf16.msra.mxu0 %v867
        %1269 = vmatprep.subr.bf16.mxu0 %v872
        %1270 = vmatpush1.bf16.msra.mxu0 %v871
        %1271 = vmatprep.subr.bf16.mxu0 %v876
        %1272 = vmatpush1.bf16.msra.mxu0 %v875
        %1273 = vmatprep.subr.bf16.mxu0 %v880
        %1274 = vmatpush1.bf16.msra.mxu0 %v879
        %1275 = vmatprep.subr.bf16.mxu0 %v884
        %1276 = vmatpush1.bf16.msra.mxu0 %v883
        %1277 = vmatprep.subr.bf16.mxu0 %v888
        %1278 = vmatpush1.bf16.msra.mxu0 %v887
        %1279 = vmatprep.subr.bf16.mxu0 %v892
        %1280 = vmatpush1.bf16.msra.mxu0 %v891
        %1281 = vmatprep.subr.bf16.mxu0 %v896
        %1282 = vmatpush1.bf16.msra.mxu0 %v895
        %1283 = vmatprep.subr.bf16.mxu0 %v900
        %1284 = vmatpush1.bf16.msra.mxu0 %v899
        %1285 = vmatprep.subr.bf16.mxu0 %v904
        %1286 = vmatpush1.bf16.msra.mxu0 %v903
        %1287 = vmatprep.subr.bf16.mxu0 %v908
        %1288 = vmatpush1.bf16.msra.mxu0 %v907
        %1289 = vmatprep.subr.bf16.mxu0 %v912
        %1290 = vmatpush1.bf16.msra.mxu0 %v911
        %1291 = vmatprep.subr.bf16.mxu0 %v916
        %1292 = vmatpush1.bf16.msra.mxu0 %v915
        %1293 = vmatprep.mubr.bf16.mxu0 %v1217
        %1294 = vmatmul.mubr.bf16.gmra.mrb[0].mxu0 %v1216
        %v1295 = vpop.f32.mrb[0].mxu0
        %v1296 = vadd.f32 %v365, %v1295
        %v1297 = vpop.f32.mrb[0].mxu0
        %v1298 = vadd.f32 %v369, %v1297
        %v1299 = vpop.f32.mrb[0].mxu0
        %v1300 = vpop.f32.mrb[0].mxu0
        %1301 = vdwg.mxu0
        %v1302 = vld [vmem:[#allocation4] sm:$0xff]
        %v1303 = vxor.u32 %v1255, 2147483648
        %v1304 = vmul.f32 %v1303, 1.442695
        %v1305 = vpow.pop %v1304
        %v1306 = vadd.f32 %v1305, 1.0
        %v1307 = vrcp.pop %v1306
        %v1308 = vmul.f32 1.0, %v1307
        %v1309 = vxor.u32 %v1257, 2147483648
        %v1310 = vmul.f32 %v1309, 1.442695
        %v1311 = vpow.pop %v1310
        %v1312 = vadd.f32 %v1311, 1.0
        %v1313 = vrcp.pop %v1312
        %v1314 = vmul.f32 1.0, %v1313
        %v1315 = vtanh.pop %v1296
        %v1316 = vxor.u32 %v1298, 2147483648
        %v1317 = vmul.f32 %v1316, 1.442695
        %v1318 = vpow.pop %v1317
        %v1319 = vadd.f32 %v1318, 1.0
        %v1320 = vrcp.pop %v1319
        %v1321 = vmul.f32 1.0, %v1320
        %v1322 = vmul.f32 %v1314, %v1302
        %v1323 = vmul.f32 %v1308, %v1315
        %v1324 = vadd.f32 %v1322, %v1323
        %v1325 = vtanh.pop %v1324
        %v1326 = vmul.f32 %v1321, %v1325
        %1327 = vst [vmem:[#allocation4] sm:$0xff] %v1324
        %v1328 = vpack.c.bf16 %v1326, %v1326
        %1329 = vst [vmem:[#allocation2 + $0x4] sm:$0xf] %v1328
        %s1330 = scalar_lea.vmem %s245, 8 [#allocation11]
        %1331 = vst [vmem:[%s1330] sm:$0xff] %v1326
        %s1332 = scalar_lea.vmem %s213, 64 [#allocation5]
        %v1333 = vld [vmem:[%s1332] sm:$0xff]
        %v1334 = vld [vmem:[%s1332 + $0x8] sm:$0xff]
        %v1335 = vld [vmem:[%s1332 + $0x10] sm:$0xff]
        %v1336 = vld [vmem:[%s1332 + $0x18] sm:$0xff]
        %v1337 = vld [vmem:[#allocation2] sm:$0xf]
        %1338 = vmatprep.subr.bf16.mxu0 %v476
        %1339 = vmatpush1.bf16.msra.mxu0 %v475
        %1340 = vmatprep.subr.bf16.mxu0 %v480
        %1341 = vmatpush1.bf16.msra.mxu0 %v479
        %1342 = vmatprep.subr.bf16.mxu0 %v484
        %1343 = vmatpush1.bf16.msra.mxu0 %v483
        %1344 = vmatprep.subr.bf16.mxu0 %v488
        %1345 = vmatpush1.bf16.msra.mxu0 %v487
        %1346 = vmatprep.subr.bf16.mxu0 %v492
        %1347 = vmatpush1.bf16.msra.mxu0 %v491
        %1348 = vmatprep.subr.bf16.mxu0 %v496
        %1349 = vmatpush1.bf16.msra.mxu0 %v495
        %1350 = vmatprep.subr.bf16.mxu0 %v500
        %1351 = vmatpush1.bf16.msra.mxu0 %v499
        %1352 = vmatprep.subr.bf16.mxu0 %v504
        %1353 = vmatpush1.bf16.msra.mxu0 %v503
        %1354 = vmatprep.subr.bf16.mxu0 0
        %1355 = vmatpush1.bf16.msra.mxu0 0
        %1356 = vmatprep.subr.bf16.mxu0 0
        %1357 = vmatpush1.bf16.msra.mxu0 0
        %1358 = vmatprep.subr.bf16.mxu0 0
        %1359 = vmatpush1.bf16.msra.mxu0 0
        %1360 = vmatprep.subr.bf16.mxu0 0
        %1361 = vmatpush1.bf16.msra.mxu0 0
        %1362 = vmatprep.subr.bf16.mxu0 0
        %1363 = vmatpush1.bf16.msra.mxu0 0
        %1364 = vmatprep.subr.bf16.mxu0 0
        %1365 = vmatpush1.bf16.msra.mxu0 0
        %1366 = vmatprep.subr.bf16.mxu0 0
        %1367 = vmatpush1.bf16.msra.mxu0 0
        %1368 = vmatprep.subr.bf16.mxu0 0
        %1369 = vmatpush1.bf16.msra.mxu0 0
        %1370 = vmatprep.mubr.bf16.mxu0 0
        %1371 = vmatmul.mubr.bf16.gmra.mrb[0].mxu0 %v1337
        %v1372 = vpop.f32.mrb[0].mxu0
        %v1373 = vadd.f32 0.0, %v1372
        %v1374 = vpop.f32.mrb[0].mxu0
        %v1375 = vadd.f32 0.0, %v1374
        %v1376 = vpop.f32.mrb[0].mxu0
        %v1377 = vpop.f32.mrb[0].mxu0
        %1378 = vdwg.mxu0
        %1379 = vmatprep.subr.bf16.mxu0 %v478
        %1380 = vmatpush1.bf16.msra.mxu0 %v477
        %1381 = vmatprep.subr.bf16.mxu0 %v482
        %1382 = vmatpush1.bf16.msra.mxu0 %v481
        %1383 = vmatprep.subr.bf16.mxu0 %v486
        %1384 = vmatpush1.bf16.msra.mxu0 %v485
        %1385 = vmatprep.subr.bf16.mxu0 %v490
        %1386 = vmatpush1.bf16.msra.mxu0 %v489
        %1387 = vmatprep.subr.bf16.mxu0 %v494
        %1388 = vmatpush1.bf16.msra.mxu0 %v493
        %1389 = vmatprep.subr.bf16.mxu0 %v498
        %1390 = vmatpush1.bf16.msra.mxu0 %v497
        %1391 = vmatprep.subr.bf16.mxu0 %v502
        %1392 = vmatpush1.bf16.msra.mxu0 %v501
        %1393 = vmatprep.subr.bf16.mxu0 %v506
        %1394 = vmatpush1.bf16.msra.mxu0 %v505
        %1395 = vmatprep.subr.bf16.mxu0 0
        %1396 = vmatpush1.bf16.msra.mxu0 0
        %1397 = vmatprep.subr.bf16.mxu0 0
        %1398 = vmatpush1.bf16.msra.mxu0 0
        %1399 = vmatprep.subr.bf16.mxu0 0
        %1400 = vmatpush1.bf16.msra.mxu0 0
        %1401 = vmatprep.subr.bf16.mxu0 0
        %1402 = vmatpush1.bf16.msra.mxu0 0
        %1403 = vmatprep.subr.bf16.mxu0 0
        %1404 = vmatpush1.bf16.msra.mxu0 0
        %1405 = vmatprep.subr.bf16.mxu0 0
        %1406 = vmatpush1.bf16.msra.mxu0 0
        %1407 = vmatprep.subr.bf16.mxu0 0
        %1408 = vmatpush1.bf16.msra.mxu0 0
        %1409 = vmatprep.subr.bf16.mxu0 0
        %1410 = vmatpush1.bf16.msra.mxu0 0
        %1411 = vmatprep.mubr.bf16.mxu0 0
        %1412 = vmatmul.mubr.bf16.gmra.mrb[0].mxu0 %v1337
        %v1413 = vpop.f32.mrb[0].mxu0
        %v1414 = vadd.f32 0.0, %v1413
        %v1415 = vpop.f32.mrb[0].mxu0
        %v1416 = vadd.f32 0.0, %v1415
        %v1417 = vpop.f32.mrb[0].mxu0
        %v1418 = vpop.f32.mrb[0].mxu0
        %1419 = vdwg.mxu0
        %v1420 = vadd.f32 %v1333, %v1373
        %v1421 = vadd.f32 %v1334, %v1375
        %v1422 = vadd.f32 %v1335, %v1414
        %v1423 = vadd.f32 %v1336, %v1416
        %v1424 = vld [vmem:[#allocation3] sm:$0xff]
        %v1425 = vxor.u32 %v1420, 2147483648
        %v1426 = vmul.f32 %v1425, 1.442695
        %v1427 = vpow.pop %v1426
        %v1428 = vadd.f32 %v1427, 1.0
        %v1429 = vrcp.pop %v1428
        %v1430 = vmul.f32 1.0, %v1429
        %v1431 = vxor.u32 %v1421, 2147483648
        %v1432 = vmul.f32 %v1431, 1.442695
        %v1433 = vpow.pop %v1432
        %v1434 = vadd.f32 %v1433, 1.0
        %v1435 = vrcp.pop %v1434
        %v1436 = vmul.f32 1.0, %v1435
        %v1437 = vtanh.pop %v1422
        %v1438 = vxor.u32 %v1423, 2147483648
        %v1439 = vmul.f32 %v1438, 1.442695
        %v1440 = vpow.pop %v1439
        %v1441 = vadd.f32 %v1440, 1.0
        %v1442 = vrcp.pop %v1441
        %v1443 = vmul.f32 1.0, %v1442
        %v1444 = vmul.f32 %v1436, %v1424
        %v1445 = vmul.f32 %v1430, %v1437
        %v1446 = vadd.f32 %v1444, %v1445
        %v1447 = vtanh.pop %v1446
        %v1448 = vmul.f32 %v1443, %v1447
        %1449 = vst [vmem:[#allocation3] sm:$0xff] %v1446
        %v1450 = vpack.c.bf16 %v1448, %v1448
        %1451 = vst [vmem:[#allocation2] sm:$0xf] %v1450
        %v1452 = vld [vmem:[#allocation2] sm:$0xff]
        %v1454 = vunpack.c.l.b16 %v1452
        %v1455 = vunpack.c.h.b16 %v1452
        %v1456 = vpack.c.b16 %v1454, %v1454
        %v1457 = vpack.c.b16 %v1455, %v1455
        %1460 = vmatprep.subr.bf16.mxu0 %v854
        %1461 = vmatpush1.bf16.msra.mxu0 %v853
        %1462 = vmatprep.subr.bf16.mxu0 %v858
        %1463 = vmatpush1.bf16.msra.mxu0 %v857
        %1464 = vmatprep.subr.bf16.mxu0 %v862
        %1465 = vmatpush1.bf16.msra.mxu0 %v861
        %1466 = vmatprep.subr.bf16.mxu0 %v866
        %1467 = vmatpush1.bf16.msra.mxu0 %v865
        %1468 = vmatprep.subr.bf16.mxu0 %v870
        %1469 = vmatpush1.bf16.msra.mxu0 %v869
        %1470 = vmatprep.subr.bf16.mxu0 %v874
        %1471 = vmatpush1.bf16.msra.mxu0 %v873
        %1472 = vmatprep.subr.bf16.mxu0 %v878
        %1473 = vmatpush1.bf16.msra.mxu0 %v877
        %1474 = vmatprep.subr.bf16.mxu0 %v882
        %1475 = vmatpush1.bf16.msra.mxu0 %v881
        %1476 = vmatprep.subr.bf16.mxu0 %v886
        %1477 = vmatpush1.bf16.msra.mxu0 %v885
        %1478 = vmatprep.subr.bf16.mxu0 %v890
        %1479 = vmatpush1.bf16.msra.mxu0 %v889
        %1480 = vmatprep.subr.bf16.mxu0 %v894
        %1481 = vmatpush1.bf16.msra.mxu0 %v893
        %1482 = vmatprep.subr.bf16.mxu0 %v898
        %1483 = vmatpush1.bf16.msra.mxu0 %v897
        %1484 = vmatprep.subr.bf16.mxu0 %v902
        %1485 = vmatpush1.bf16.msra.mxu0 %v901
        %1486 = vmatprep.subr.bf16.mxu0 %v906
        %1487 = vmatpush1.bf16.msra.mxu0 %v905
        %1488 = vmatprep.subr.bf16.mxu0 %v910
        %1489 = vmatpush1.bf16.msra.mxu0 %v909
        %1490 = vmatprep.subr.bf16.mxu0 %v914
        %1491 = vmatpush1.bf16.msra.mxu0 %v913
        %1492 = vmatprep.mubr.bf16.mxu0 %v1457
        %1493 = vmatmul.mubr.bf16.gmra.mrb[0].mxu0 %v1456
        %v1494 = vpop.f32.mrb[0].mxu0
        %v1495 = vadd.f32 %v357, %v1494
        %v1496 = vpop.f32.mrb[0].mxu0
        %v1497 = vadd.f32 %v361, %v1496
        %v1498 = vpop.f32.mrb[0].mxu0
        %v1499 = vpop.f32.mrb[0].mxu0
        %1500 = vdwg.mxu0
        %1501 = vmatprep.subr.bf16.mxu0 %v856
        %1502 = vmatpush1.bf16.msra.mxu0 %v855
        %1503 = vmatprep.subr.bf16.mxu0 %v860
        %1504 = vmatpush1.bf16.msra.mxu0 %v859
        %1505 = vmatprep.subr.bf16.mxu0 %v864
        %1506 = vmatpush1.bf16.msra.mxu0 %v863
        %1507 = vmatprep.subr.bf16.mxu0 %v868
        %1508 = vmatpush1.bf16.msra.mxu0 %v867
        %1509 = vmatprep.subr.bf16.mxu0 %v872
        %1510 = vmatpush1.bf16.msra.mxu0 %v871
        %1511 = vmatprep.subr.bf16.mxu0 %v876
        %1512 = vmatpush1.bf16.msra.mxu0 %v875
        %1513 = vmatprep.subr.bf16.mxu0 %v880
        %1514 = vmatpush1.bf16.msra.mxu0 %v879
        %1515 = vmatprep.subr.bf16.mxu0 %v884
        %1516 = vmatpush1.bf16.msra.mxu0 %v883
        %1517 = vmatprep.subr.bf16.mxu0 %v888
        %1518 = vmatpush1.bf16.msra.mxu0 %v887
        %1519 = vmatprep.subr.bf16.mxu0 %v892
        %1520 = vmatpush1.bf16.msra.mxu0 %v891
        %1521 = vmatprep.subr.bf16.mxu0 %v896
        %1522 = vmatpush1.bf16.msra.mxu0 %v895
        %1523 = vmatprep.subr.bf16.mxu0 %v900
        %1524 = vmatpush1.bf16.msra.mxu0 %v899
        %1525 = vmatprep.subr.bf16.mxu0 %v904
        %1526 = vmatpush1.bf16.msra.mxu0 %v903
        %1527 = vmatprep.subr.bf16.mxu0 %v908
        %1528 = vmatpush1.bf16.msra.mxu0 %v907
        %1529 = vmatprep.subr.bf16.mxu0 %v912
        %1530 = vmatpush1.bf16.msra.mxu0 %v911
        %1531 = vmatprep.subr.bf16.mxu0 %v916
        %1532 = vmatpush1.bf16.msra.mxu0 %v915
        %1533 = vmatprep.mubr.bf16.mxu0 %v1457
        %1534 = vmatmul.mubr.bf16.gmra.mrb[0].mxu0 %v1456
        %v1535 = vpop.f32.mrb[0].mxu0
        %v1536 = vadd.f32 %v365, %v1535
        %v1537 = vpop.f32.mrb[0].mxu0
        %v1538 = vadd.f32 %v369, %v1537
        %v1539 = vpop.f32.mrb[0].mxu0
        %v1540 = vpop.f32.mrb[0].mxu0
        %1541 = vdwg.mxu0
        %v1542 = vld [vmem:[#allocation4] sm:$0xff]
        %v1543 = vxor.u32 %v1495, 2147483648
        %v1544 = vmul.f32 %v1543, 1.442695
        %v1545 = vpow.pop %v1544
        %v1546 = vadd.f32 %v1545, 1.0
        %v1547 = vrcp.pop %v1546
        %v1548 = vmul.f32 1.0, %v1547
        %v1549 = vxor.u32 %v1497, 2147483648
        %v1550 = vmul.f32 %v1549, 1.442695
        %v1551 = vpow.pop %v1550
        %v1552 = vadd.f32 %v1551, 1.0
        %v1553 = vrcp.pop %v1552
        %v1554 = vmul.f32 1.0, %v1553
        %v1555 = vtanh.pop %v1536
        %v1556 = vxor.u32 %v1538, 2147483648
        %v1557 = vmul.f32 %v1556, 1.442695
        %v1558 = vpow.pop %v1557
        %v1559 = vadd.f32 %v1558, 1.0
        %v1560 = vrcp.pop %v1559
        %v1561 = vmul.f32 1.0, %v1560
        %v1562 = vmul.f32 %v1554, %v1542
        %v1563 = vmul.f32 %v1548, %v1555
        %v1564 = vadd.f32 %v1562, %v1563
        %v1565 = vtanh.pop %v1564
        %v1566 = vmul.f32 %v1561, %v1565
        %1567 = vst [vmem:[#allocation4] sm:$0xff] %v1564
        %v1568 = vpack.c.bf16 %v1566, %v1566
        %1569 = vst [vmem:[#allocation2 + $0x4] sm:$0xf] %v1568
        %s1570 = scalar_lea.vmem %s245, 16 [#allocation11]
        %1571 = vst [vmem:[%s1570] sm:$0xff] %v1566
        %s1572 = scalar_lea.vmem %s213, 96 [#allocation5]
        %v1573 = vld [vmem:[%s1572] sm:$0xff]
        %v1574 = vld [vmem:[%s1572 + $0x8] sm:$0xff]
        %v1575 = vld [vmem:[%s1572 + $0x10] sm:$0xff]
        %v1576 = vld [vmem:[%s1572 + $0x18] sm:$0xff]
        %v1577 = vld [vmem:[#allocation2] sm:$0xf]
        %1578 = vmatprep.subr.bf16.mxu0 %v476
        %1579 = vmatpush1.bf16.msra.mxu0 %v475
        %1580 = vmatprep.subr.bf16.mxu0 %v480
        %1581 = vmatpush1.bf16.msra.mxu0 %v479
        %1582 = vmatprep.subr.bf16.mxu0 %v484
        %1583 = vmatpush1.bf16.msra.mxu0 %v483
        %1584 = vmatprep.subr.bf16.mxu0 %v488
        %1585 = vmatpush1.bf16.msra.mxu0 %v487
        %1586 = vmatprep.subr.bf16.mxu0 %v492
        %1587 = vmatpush1.bf16.msra.mxu0 %v491
        %1588 = vmatprep.subr.bf16.mxu0 %v496
        %1589 = vmatpush1.bf16.msra.mxu0 %v495
        %1590 = vmatprep.subr.bf16.mxu0 %v500
        %1591 = vmatpush1.bf16.msra.mxu0 %v499
        %1592 = vmatprep.subr.bf16.mxu0 %v504
        %1593 = vmatpush1.bf16.msra.mxu0 %v503
        %1594 = vmatprep.subr.bf16.mxu0 0
        %1595 = vmatpush1.bf16.msra.mxu0 0
        %1596 = vmatprep.subr.bf16.mxu0 0
        %1597 = vmatpush1.bf16.msra.mxu0 0
        %1598 = vmatprep.subr.bf16.mxu0 0
        %1599 = vmatpush1.bf16.msra.mxu0 0
        %1600 = vmatprep.subr.bf16.mxu0 0
        %1601 = vmatpush1.bf16.msra.mxu0 0
        %1602 = vmatprep.subr.bf16.mxu0 0
        %1603 = vmatpush1.bf16.msra.mxu0 0
        %1604 = vmatprep.subr.bf16.mxu0 0
        %1605 = vmatpush1.bf16.msra.mxu0 0
        %1606 = vmatprep.subr.bf16.mxu0 0
        %1607 = vmatpush1.bf16.msra.mxu0 0
        %1608 = vmatprep.subr.bf16.mxu0 0
        %1609 = vmatpush1.bf16.msra.mxu0 0
        %1610 = vmatprep.mubr.bf16.mxu0 0
        %1611 = vmatmul.mubr.bf16.gmra.mrb[0].mxu0 %v1577
        %v1612 = vpop.f32.mrb[0].mxu0
        %v1613 = vadd.f32 0.0, %v1612
        %v1614 = vpop.f32.mrb[0].mxu0
        %v1615 = vadd.f32 0.0, %v1614
        %v1616 = vpop.f32.mrb[0].mxu0
        %v1617 = vpop.f32.mrb[0].mxu0
        %1618 = vdwg.mxu0
        %1619 = vmatprep.subr.bf16.mxu0 %v478
        %1620 = vmatpush1.bf16.msra.mxu0 %v477
        %1621 = vmatprep.subr.bf16.mxu0 %v482
        %1622 = vmatpush1.bf16.msra.mxu0 %v481
        %1623 = vmatprep.subr.bf16.mxu0 %v486
        %1624 = vmatpush1.bf16.msra.mxu0 %v485
        %1625 = vmatprep.subr.bf16.mxu0 %v490
        %1626 = vmatpush1.bf16.msra.mxu0 %v489
        %1627 = vmatprep.subr.bf16.mxu0 %v494
        %1628 = vmatpush1.bf16.msra.mxu0 %v493
        %1629 = vmatprep.subr.bf16.mxu0 %v498
        %1630 = vmatpush1.bf16.msra.mxu0 %v497
        %1631 = vmatprep.subr.bf16.mxu0 %v502
        %1632 = vmatpush1.bf16.msra.mxu0 %v501
        %1633 = vmatprep.subr.bf16.mxu0 %v506
        %1634 = vmatpush1.bf16.msra.mxu0 %v505
        %1635 = vmatprep.subr.bf16.mxu0 0
        %1636 = vmatpush1.bf16.msra.mxu0 0
        %1637 = vmatprep.subr.bf16.mxu0 0
        %1638 = vmatpush1.bf16.msra.mxu0 0
        %1639 = vmatprep.subr.bf16.mxu0 0
        %1640 = vmatpush1.bf16.msra.mxu0 0
        %1641 = vmatprep.subr.bf16.mxu0 0
        %1642 = vmatpush1.bf16.msra.mxu0 0
        %1643 = vmatprep.subr.bf16.mxu0 0
        %1644 = vmatpush1.bf16.msra.mxu0 0
        %1645 = vmatprep.subr.bf16.mxu0 0
        %1646 = vmatpush1.bf16.msra.mxu0 0
        %1647 = vmatprep.subr.bf16.mxu0 0
        %1648 = vmatpush1.bf16.msra.mxu0 0
        %1649 = vmatprep.subr.bf16.mxu0 0
        %1650 = vmatpush1.bf16.msra.mxu0 0
        %1651 = vmatprep.mubr.bf16.mxu0 0
        %1652 = vmatmul.mubr.bf16.gmra.mrb[0].mxu0 %v1577
        %v1653 = vpop.f32.mrb[0].mxu0
        %v1654 = vadd.f32 0.0, %v1653
        %v1655 = vpop.f32.mrb[0].mxu0
        %v1656 = vadd.f32 0.0, %v1655
        %v1657 = vpop.f32.mrb[0].mxu0
        %v1658 = vpop.f32.mrb[0].mxu0
        %1659 = vdwg.mxu0
        %v1660 = vadd.f32 %v1573, %v1613
        %v1661 = vadd.f32 %v1574, %v1615
        %v1662 = vadd.f32 %v1575, %v1654
        %v1663 = vadd.f32 %v1576, %v1656
        %v1664 = vld [vmem:[#allocation3] sm:$0xff]
        %v1665 = vxor.u32 %v1660, 2147483648
        %v1666 = vmul.f32 %v1665, 1.442695
        %v1667 = vpow.pop %v1666
        %v1668 = vadd.f32 %v1667, 1.0
        %v1669 = vrcp.pop %v1668
        %v1670 = vmul.f32 1.0, %v1669
        %v1671 = vxor.u32 %v1661, 2147483648
        %v1672 = vmul.f32 %v1671, 1.442695
        %v1673 = vpow.pop %v1672
        %v1674 = vadd.f32 %v1673, 1.0
        %v1675 = vrcp.pop %v1674
        %v1676 = vmul.f32 1.0, %v1675
        %v1677 = vtanh.pop %v1662
        %v1678 = vxor.u32 %v1663, 2147483648
        %v1679 = vmul.f32 %v1678, 1.442695
        %v1680 = vpow.pop %v1679
        %v1681 = vadd.f32 %v1680, 1.0
        %v1682 = vrcp.pop %v1681
        %v1683 = vmul.f32 1.0, %v1682
        %v1684 = vmul.f32 %v1676, %v1664
        %v1685 = vmul.f32 %v1670, %v1677
        %v1686 = vadd.f32 %v1684, %v1685
        %v1687 = vtanh.pop %v1686
        %v1688 = vmul.f32 %v1683, %v1687
        %1689 = vst [vmem:[#allocation3] sm:$0xff] %v1686
        %v1690 = vpack.c.bf16 %v1688, %v1688
        %1691 = vst [vmem:[#allocation2] sm:$0xf] %v1690
        %v1692 = vld [vmem:[#allocation2] sm:$0xff]
        %v1694 = vunpack.c.l.b16 %v1692
        %v1695 = vunpack.c.h.b16 %v1692
        %v1696 = vpack.c.b16 %v1694, %v1694
        %v1697 = vpack.c.b16 %v1695, %v1695
        %1700 = vmatprep.subr.bf16.mxu0 %v854
        %1701 = vmatpush1.bf16.msra.mxu0 %v853
        %1702 = vmatprep.subr.bf16.mxu0 %v858
        %1703 = vmatpush1.bf16.msra.mxu0 %v857
        %1704 = vmatprep.subr.bf16.mxu0 %v862
        %1705 = vmatpush1.bf16.msra.mxu0 %v861
        %1706 = vmatprep.subr.bf16.mxu0 %v866
        %1707 = vmatpush1.bf16.msra.mxu0 %v865
        %1708 = vmatprep.subr.bf16.mxu0 %v870
        %1709 = vmatpush1.bf16.msra.mxu0 %v869
        %1710 = vmatprep.subr.bf16.mxu0 %v874
        %1711 = vmatpush1.bf16.msra.mxu0 %v873
        %1712 = vmatprep.subr.bf16.mxu0 %v878
        %1713 = vmatpush1.bf16.msra.mxu0 %v877
        %1714 = vmatprep.subr.bf16.mxu0 %v882
        %1715 = vmatpush1.bf16.msra.mxu0 %v881
        %1716 = vmatprep.subr.bf16.mxu0 %v886
        %1717 = vmatpush1.bf16.msra.mxu0 %v885
        %1718 = vmatprep.subr.bf16.mxu0 %v890
        %1719 = vmatpush1.bf16.msra.mxu0 %v889
        %1720 = vmatprep.subr.bf16.mxu0 %v894
        %1721 = vmatpush1.bf16.msra.mxu0 %v893
        %1722 = vmatprep.subr.bf16.mxu0 %v898
        %1723 = vmatpush1.bf16.msra.mxu0 %v897
        %1724 = vmatprep.subr.bf16.mxu0 %v902
        %1725 = vmatpush1.bf16.msra.mxu0 %v901
        %1726 = vmatprep.subr.bf16.mxu0 %v906
        %1727 = vmatpush1.bf16.msra.mxu0 %v905
        %1728 = vmatprep.subr.bf16.mxu0 %v910
        %1729 = vmatpush1.bf16.msra.mxu0 %v909
        %1730 = vmatprep.subr.bf16.mxu0 %v914
        %1731 = vmatpush1.bf16.msra.mxu0 %v913
        %1732 = vmatprep.mubr.bf16.mxu0 %v1697
        %1733 = vmatmul.mubr.bf16.gmra.mrb[0].mxu0 %v1696
        %v1734 = vpop.f32.mrb[0].mxu0
        %v1735 = vadd.f32 %v357, %v1734
        %v1736 = vpop.f32.mrb[0].mxu0
        %v1737 = vadd.f32 %v361, %v1736
        %v1738 = vpop.f32.mrb[0].mxu0
        %v1739 = vpop.f32.mrb[0].mxu0
        %1740 = vdwg.mxu0
        %1741 = vmatprep.subr.bf16.mxu0 %v856
        %1742 = vmatpush1.bf16.msra.mxu0 %v855
        %1743 = vmatprep.subr.bf16.mxu0 %v860
        %1744 = vmatpush1.bf16.msra.mxu0 %v859
        %1745 = vmatprep.subr.bf16.mxu0 %v864
        %1746 = vmatpush1.bf16.msra.mxu0 %v863
        %1747 = vmatprep.subr.bf16.mxu0 %v868
        %1748 = vmatpush1.bf16.msra.mxu0 %v867
        %1749 = vmatprep.subr.bf16.mxu0 %v872
        %1750 = vmatpush1.bf16.msra.mxu0 %v871
        %1751 = vmatprep.subr.bf16.mxu0 %v876
        %1752 = vmatpush1.bf16.msra.mxu0 %v875
        %1753 = vmatprep.subr.bf16.mxu0 %v880
        %1754 = vmatpush1.bf16.msra.mxu0 %v879
        %1755 = vmatprep.subr.bf16.mxu0 %v884
        %1756 = vmatpush1.bf16.msra.mxu0 %v883
        %1757 = vmatprep.subr.bf16.mxu0 %v888
        %1758 = vmatpush1.bf16.msra.mxu0 %v887
        %1759 = vmatprep.subr.bf16.mxu0 %v892
        %1760 = vmatpush1.bf16.msra.mxu0 %v891
        %1761 = vmatprep.subr.bf16.mxu0 %v896
        %1762 = vmatpush1.bf16.msra.mxu0 %v895
        %1763 = vmatprep.subr.bf16.mxu0 %v900
        %1764 = vmatpush1.bf16.msra.mxu0 %v899
        %1765 = vmatprep.subr.bf16.mxu0 %v904
        %1766 = vmatpush1.bf16.msra.mxu0 %v903
        %1767 = vmatprep.subr.bf16.mxu0 %v908
        %1768 = vmatpush1.bf16.msra.mxu0 %v907
        %1769 = vmatprep.subr.bf16.mxu0 %v912
        %1770 = vmatpush1.bf16.msra.mxu0 %v911
        %1771 = vmatprep.subr.bf16.mxu0 %v916
        %1772 = vmatpush1.bf16.msra.mxu0 %v915
        %1773 = vmatprep.mubr.bf16.mxu0 %v1697
        %1774 = vmatmul.mubr.bf16.gmra.mrb[0].mxu0 %v1696
        %v1775 = vpop.f32.mrb[0].mxu0
        %v1776 = vadd.f32 %v365, %v1775
        %v1777 = vpop.f32.mrb[0].mxu0
        %v1778 = vadd.f32 %v369, %v1777
        %v1779 = vpop.f32.mrb[0].mxu0
        %v1780 = vpop.f32.mrb[0].mxu0
        %1781 = vdwg.mxu0
        %v1782 = vld [vmem:[#allocation4] sm:$0xff]
        %v1783 = vxor.u32 %v1735, 2147483648
        %v1784 = vmul.f32 %v1783, 1.442695
        %v1785 = vpow.pop %v1784
        %v1786 = vadd.f32 %v1785, 1.0
        %v1787 = vrcp.pop %v1786
        %v1788 = vmul.f32 1.0, %v1787
        %v1789 = vxor.u32 %v1737, 2147483648
        %v1790 = vmul.f32 %v1789, 1.442695
        %v1791 = vpow.pop %v1790
        %v1792 = vadd.f32 %v1791, 1.0
        %v1793 = vrcp.pop %v1792
        %v1794 = vmul.f32 1.0, %v1793
        %v1795 = vtanh.pop %v1776
        %v1796 = vxor.u32 %v1778, 2147483648
        %v1797 = vmul.f32 %v1796, 1.442695
        %v1798 = vpow.pop %v1797
        %v1799 = vadd.f32 %v1798, 1.0
        %v1800 = vrcp.pop %v1799
        %v1801 = vmul.f32 1.0, %v1800
        %v1802 = vmul.f32 %v1794, %v1782
        %v1803 = vmul.f32 %v1788, %v1795
        %v1804 = vadd.f32 %v1802, %v1803
        %v1805 = vtanh.pop %v1804
        %v1806 = vmul.f32 %v1801, %v1805
        %1807 = vst [vmem:[#allocation4] sm:$0xff] %v1804
        %v1808 = vpack.c.bf16 %v1806, %v1806
        %1809 = vst [vmem:[#allocation2 + $0x4] sm:$0xf] %v1808
        %s1810 = scalar_lea.vmem %s245, 24 [#allocation11]
        %1811 = vst [vmem:[%s1810] sm:$0xff] %v1806
        %s1812 = sand.u32 %s119, 1
        %s1813 = scalar_lea.sflag [#allocation7], %s1812
        %s1814 = sand.u32 %s119, 1
        %s1815 = smul.addr %s1814, 32
        %s1816 = scalar_lea.vmem [#allocation11], %s1815
        // Predicated region
        $region53: #{tpu_custom_call.1} parent=35 // pred_check
          %p1817 = pneg %p129
        $region54: #{tpu_custom_call.1} parent=35 // pred_check_branch
          %1819 = sbr.rel (%p1817) target = $region56
        $region55: #{tpu_custom_call.1} parent=35 // pred_region
          %s1820 = smul.u32 4, %s22
          %s1822 = ssub.s32 512, 512
          %1823 = vsyncadd %s1813, %s1822
          %s1824 = smul.addr %s1820, 128
          %s1825 = scalar_lea.hbm %s4, %s1824
          %s1826 = sshll.u32 %s1816, 4
          %s1827 = int_to_ptr.vmem [resolvable:$true] %s1826
          %1832 = dma.vmem_to_hbm [thread:$0]  %s1827, 512, %s1825, %s1813, 128, 128, 8
        $region56: #{tpu_custom_call.1} parent=35 // pred_fallthru
          _
      $region36: #{tpu_custom_call.1} parent=5 // pred_fallthru
        _
      %p1833 = scmp.le.s32.totalorder 2, %s17
      // Predicated region
      $region57: #{tpu_custom_call.1} parent=5 // pred_check
        %p1834 = pneg %p1833
      $region58: #{tpu_custom_call.1} parent=5 // pred_check_branch
        %1836 = sbr.rel (%p1834) target = $region60
      $region59: #{tpu_custom_call.1} parent=5 // pred_region
        %s1837 = ssub.s32 %s17, 2
        // Predicated region
        $region61: #{tpu_custom_call.1} parent=59 // pred_check
          %p1838 = pneg %p135
        $region62: #{tpu_custom_call.1} parent=59 // pred_check_branch
          %1840 = sbr.rel (%p1838) target = $region64
        $region63: #{tpu_custom_call.1} parent=59 // pred_region
          %s1841 = sand.u32 %s120, 1
          %s1842 = scalar_lea.sflag [#allocation7], %s1841
          %s1843 = sand.u32 %s120, 1
          %s1844 = smul.addr %s1843, 32
          %s1845 = scalar_lea.vmem [#allocation11], %s1844
          %1846 = dma.done %s1842, 512
        $region64: #{tpu_custom_call.1} parent=59 // pred_fallthru
          _
      $region60: #{tpu_custom_call.1} parent=5 // pred_fallthru
        _
    $region6: #{tpu_custom_call.1} parent=1 // loop_footer
      %s21 = sadd.s32 1, %s17
    $region7: #{tpu_custom_call.1} parent=1 // loop_footer_branch
      %16 = sbr.rel target = $region3
    $region8: #{tpu_custom_call.1} parent=1 // loop_exit
      _
    %1847 = vsyncpa [#allocation6], 1
    %s1848 = scalar_lea.sflag [#allocation6], 1
    %1849 = vsyncpa %s1848, 1
    %1850 = vsyncpa [#allocation9], 1
    %1851 = vsyncpa [#allocation7], 1
    %s1852 = scalar_lea.sflag [#allocation7], 1
    %1853 = vsyncpa %s1852, 1

</llo_original>
